<compile_context>
chip_gen: v7x
topology: tpu7x:2x2x1
jax: 0.10.0
libtpu: 0.0.40
codegen_flags: <defaults>
</compile_context>

<pallas_src>
import math

import jax
import jax.numpy as jnp
from jax import lax
from jax.experimental import pallas as pl
from jax.experimental.pallas import tpu as pltpu

# ----------------------------- config ---------------------------------------
INPUT_DIM = 1
MODEL_DIM = 32
NUM_HEADS = 4
NUM_LAYERS = 2
PRED_LEN = 4
BATCH = 2
SEQ = 8          # lookback_len


# ------------------------- in-kernel helpers ---------------------------------
def _layernorm(x, gamma, beta, eps=1e-5):
    mu = jnp.mean(x, axis=-1, keepdims=True)
    var = jnp.mean((x - mu) ** 2, axis=-1, keepdims=True)
    return (x - mu) * lax.rsqrt(var + eps) * gamma + beta


# --------------------------- fused forward kernel ----------------------------
def _make_fused_kernel(batch, seq, num_heads, num_layers, model_dim, ffn_dim):
    B, S, H, L, D, F = batch, seq, num_heads, num_layers, model_dim, ffn_dim
    BS = B * S
    Dh = D // H
    f32 = jnp.float32

    def kernel(x_ref, pos_ref, mask_ref, ones_ref, emb_ref, wqkv_ref, wo_ref,
               w1_ref, w2_ref, vec_ref, wh_ref, bh_ref, o_ref):
        # ---- input embedding (input_dim == 1) + positional feature (last lane) ----
        emb = emb_ref[...]                                            # (2, D): W_emb row, b_emb row
        h = x_ref[...] * emb[0:1, :] + emb[1:2, :] + pos_ref[...]     # (BS, D)

        mask = mask_ref[...]                                          # (BS, H*BS) block-diag + causal
        ones_blk = ones_ref[...]                                      # (H*BS, H*BS) block-diag ones

        # head-lane selector iota, hoisted out of the layer loop
        lane = lax.broadcasted_iota(jnp.int32, (BS, D), 1)

        for l in range(L):
            vl = vec_ref[l]                                           # (10, F) packed bias/LN rows

            # ---------- Q/K/V projections: 3 lane-dense matmuls (Q-scale folded) ----------
            q = jnp.dot(h, wqkv_ref[3 * l + 0], preferred_element_type=f32) + vl[0:1, :D]
            k = jnp.dot(h, wqkv_ref[3 * l + 1], preferred_element_type=f32) + vl[1:2, :D]
            v = jnp.dot(h, wqkv_ref[3 * l + 2], preferred_element_type=f32) + vl[2:3, :D]

            # ---------- stack K/V per head along sublanes with head-lane masking ----------
            k_parts, v_parts = [], []
            for hd in range(H):
                sel = (lane >= hd * Dh) & (lane < (hd + 1) * Dh)
                k_parts.append(jnp.where(sel, k, 0.0))
                v_parts.append(jnp.where(sel, v, 0.0))
            k_stack = jnp.concatenate(k_parts, axis=0)                # (H*BS, D)
            v_stack = jnp.concatenate(v_parts, axis=0)                # (H*BS, D)

            # ---------- all-head, all-batch attention in 3 matmuls ----------
            # scores: MXU handles the transpose (no explicit k.T materialization)
            s_all = lax.dot_general(q, k_stack, (((1,), (1,)), ((), ())),
                                    preferred_element_type=f32) + mask        # (BS, H*BS)
            m = jnp.max(s_all, axis=-1, keepdims=True)                         # shared row max
            e = jnp.exp(s_all - m)                                             # masked entries -> 0
            denom = jnp.dot(e, ones_blk, preferred_element_type=f32)           # per-head sums, broadcast
            p = e / denom                                                      # per-head softmax
            ctx = jnp.dot(p, v_stack, preferred_element_type=f32)              # (BS, D), heads in place
            attn = jnp.dot(ctx, wo_ref[l], preferred_element_type=f32) + vl[3:4, :D]

            # residual + LayerNorm 1 (post-norm, norm_first=False)
            h1 = _layernorm(h + attn, vl[4:5, :D], vl[5:6, :D])

            # ---------- feed-forward (ReLU) ----------
            ff = jnp.dot(h1, w1_ref[l], preferred_element_type=f32) + vl[6:7, :]
            ff = jnp.maximum(ff, 0.0)
            ff = jnp.dot(ff, w2_ref[l], preferred_element_type=f32) + vl[7:8, :D]

            # residual + LayerNorm 2
            h = _layernorm(h1 + ff, vl[8:9, :D], vl[9:10, :D])

        # ---------- last-token selection fused as a tiny matmul + fused SOH/RUL heads ----------
        r = lax.broadcasted_iota(jnp.int32, (B, BS), 0)
        c = lax.broadcasted_iota(jnp.int32, (B, BS), 1)
        sel_last = (c == r * S + (S - 1)).astype(f32)                 # (B, BS)
        x_last = jnp.dot(sel_last, h, preferred_element_type=f32)     # (B, D)
        o_ref[...] = (jnp.dot(x_last, wh_ref[...], preferred_element_type=f32)
                      + bh_ref[...])

    return kernel


# ------------------------------ wrapper --------------------------------------
def forward(x, kp, num_heads=NUM_HEADS):
    B, S, _ = x.shape
    L, D, F = kp["w1"].shape
    P1 = kp["wh"].shape[1]
    H = num_heads
    BS = B * S

    # ---- shape-only constants (folded by XLA under jit; no kernel-side iota/floor work) ----
    pos_col = jnp.arange(S, dtype=jnp.float32) / S
    pos = jnp.zeros((BS, D), jnp.float32).at[:, D - 1].set(jnp.tile(pos_col, (B,)))

    tok = jnp.arange(BS)
    bidx = tok // S
    sidx = tok % S
    allowed = (bidx[:, None] == bidx[None, :]) & (sidx[None, :] <= sidx[:, None])
    mask_bs = jnp.where(allowed, 0.0, -1e30).astype(jnp.float32)      # (BS, BS)
    mask_all = jnp.tile(mask_bs, (1, H))                              # (BS, H*BS)

    hcol = jnp.arange(H * BS)
    ones_block = (hcol[:, None] // BS == hcol[None, :] // BS).astype(jnp.float32)  # (H*BS, H*BS)

    def full(a):
        nd = a.ndim
        return pl.BlockSpec(a.shape, lambda i, _nd=nd: (0,) * _nd)

    x2d = x.reshape(BS, 1)
    inputs = (x2d, pos, mask_all, ones_block, kp["emb"], kp["wqkv"], kp["wo"],
              kp["w1"], kp["w2"], kp["vecs"], kp["wh"], kp["bh"])

    out = pl.pallas_call(
        _make_fused_kernel(B, S, H, L, D, F),
        out_shape=jax.ShapeDtypeStruct((B, P1), jnp.float32),
        grid=(1,),
        in_specs=[full(a) for a in inputs],
        out_specs=pl.BlockSpec((B, P1), lambda i: (0, 0)),
        compiler_params=pltpu.CompilerParams(dimension_semantics=("arbitrary",)),
    )(*inputs)
    return out[:, :P1 - 1], out[:, P1 - 1]


# ---------------------------- deterministic init ------------------------------
def init_params(key, input_dim, model_dim, num_heads, num_layers, pred_len):
    D = model_dim
    F = 4 * D
    ks = jax.random.split(key, 6 + 6 * num_layers)
    it = iter(ks)

    def w(shape, fan_in):
        return (jax.random.normal(next(it), shape, jnp.float32) / math.sqrt(fan_in)).astype(jnp.float32)

    params = {
        "emb_w": w((input_dim, D - 1), input_dim),
        "emb_b": jnp.zeros((D - 1,), jnp.float32),
        "layers": [],
        "w_soh": w((D, pred_len), D),
        "b_soh": jnp.zeros((1, pred_len), jnp.float32),
        "w_rul": w((D, 1), D),
        "b_rul": jnp.zeros((1, 1), jnp.float32),
    }
    for _ in range(num_layers):
        lp = {
            "wqkv": w((D, 3 * D), D),
            "bqkv": jnp.zeros((1, 3 * D), jnp.float32),
            "wo": w((D, D), D),
            "bo": jnp.zeros((1, D), jnp.float32),
            "g1": jnp.ones((1, D), jnp.float32),
            "be1": jnp.zeros((1, D), jnp.float32),
            "w1": w((D, F), D),
            "b1": jnp.zeros((1, F), jnp.float32),
            "w2": w((F, D), F),
            "b2": jnp.zeros((1, D), jnp.float32),
            "g2": jnp.ones((1, D), jnp.float32),
            "be2": jnp.zeros((1, D), jnp.float32),
        }
        params["layers"].append(lp)
    return params


# ------------------- host-side repack into the kernel layout ------------------
def prepare_kernel_params(params, num_heads):
    D = params["w_soh"].shape[0]
    H = num_heads
    Dh = D // H
    F = params["layers"][0]["w1"].shape[1]
    L = len(params["layers"])
    scale = 1.0 / math.sqrt(Dh)          # PyTorch MHA query scaling, folded into Wq/bq

    # Fold the (1 -> D-1) embedding into full-D rows; the last lane is reserved for the
    # position feature (added via the precomputed `pos` constant in the wrapper).
    w_full = jnp.concatenate(
        [params["emb_w"], jnp.zeros((params["emb_w"].shape[0], 1), jnp.float32)], axis=1)
    b_full = jnp.concatenate([params["emb_b"], jnp.zeros((1,), jnp.float32)])[None, :]
    emb = jnp.concatenate([w_full, b_full], axis=0)                      # (2, D)

    def pad_row(v, width=F):                                             # (..., w) -> (F,)
        flat = jnp.asarray(v).reshape(-1)
        return jnp.pad(flat, (0, width - flat.shape[0]))

    wqkv, wo, w1, w2, vecs = [], [], [], [], []
    for lp in params["layers"]:
        wq = lp["wqkv"][:, 0 * D:1 * D] * scale                          # (D, D), scale folded
        wk = lp["wqkv"][:, 1 * D:2 * D]
        wv = lp["wqkv"][:, 2 * D:3 * D]
        bq = lp["bqkv"][0, 0 * D:1 * D] * scale
        bk = lp["bqkv"][0, 1 * D:2 * D]
        bv = lp["bqkv"][0, 2 * D:3 * D]
        wqkv.append(jnp.stack([wq, wk, wv], axis=0))                     # (3, D, D) lane-dense
        wo.append(lp["wo"])                                              # (D, D)
        w1.append(lp["w1"])                                              # (D, F)
        w2.append(lp["w2"])                                              # (F, D)
        vecs.append(jnp.stack(
            [pad_row(bq), pad_row(bk), pad_row(bv), pad_row(lp["bo"]),
             pad_row(lp["g1"]), pad_row(lp["be1"]), lp["b1"][0],
             pad_row(lp["b2"]), pad_row(lp["g2"]), pad_row(lp["be2"])], axis=0))   # (10, F)

    return {
        "emb": emb,
        "wqkv": jnp.stack(wqkv, axis=0).reshape(L * 3, D, D),            # (L*3, D, D)
        "wo": jnp.stack(wo, axis=0),                                     # (L, D, D)
        "w1": jnp.stack(w1, axis=0),                                     # (L, D, F)
        "w2": jnp.stack(w2, axis=0),                                     # (L, F, D)
        "vecs": jnp.stack(vecs, axis=0),                                 # (L, 10, F)
        "wh": jnp.concatenate([params["w_soh"], params["w_rul"]], axis=1),   # (D, P+1)
        "bh": jnp.concatenate([params["b_soh"], params["b_rul"]], axis=1),   # (1, P+1)
    }


# ----------------------------------- main ------------------------------------
if __name__ == "__main__":
    key = jax.random.PRNGKey(0)
    pkey, xkey = jax.random.split(key)
    params = init_params(pkey, INPUT_DIM, MODEL_DIM, NUM_HEADS, NUM_LAYERS, PRED_LEN)
    kparams = prepare_kernel_params(params, NUM_HEADS)
    x = jax.random.normal(xkey, (BATCH, SEQ, INPUT_DIM), jnp.float32)

    soh, rul = jax.jit(forward)(x, kparams)
    jax.block_until_ready((soh, rul))

    assert soh.shape == (BATCH, PRED_LEN), soh.shape
    assert rul.shape == (BATCH,), rul.shape
    assert bool(jnp.all(jnp.isfinite(soh))) and bool(jnp.all(jnp.isfinite(rul)))
    print("KERNEL_OK")
</pallas_src>

<mosaic_0001>
module attributes {stable_mosaic.version = 11 : i64} {
  func.func @kernel(%arg0: i32, %arg1: memref<16x1xf32, #tpu.memory_space<vmem>>, %arg2: memref<16x32xf32, #tpu.memory_space<vmem>>, %arg3: memref<16x64xf32, #tpu.memory_space<vmem>>, %arg4: memref<64x64xf32, #tpu.memory_space<vmem>>, %arg5: memref<2x32xf32, #tpu.memory_space<vmem>>, %arg6: memref<6x32x32xf32, #tpu.memory_space<vmem>>, %arg7: memref<2x32x32xf32, #tpu.memory_space<vmem>>, %arg8: memref<2x32x128xf32, #tpu.memory_space<vmem>>, %arg9: memref<2x128x32xf32, #tpu.memory_space<vmem>>, %arg10: memref<2x10x128xf32, #tpu.memory_space<vmem>>, %arg11: memref<32x5xf32, #tpu.memory_space<vmem>>, %arg12: memref<1x5xf32, #tpu.memory_space<vmem>>, %arg13: memref<2x5xf32, #tpu.memory_space<vmem>>) attributes {dimension_semantics = [#tpu.dimension_semantics<arbitrary>], iteration_bounds = array<i64: 1>, scalar_prefetch = 0 : i64, scratch_operands = 0 : i64, tpu.core_type = #tpu.core_type<tc>, window_params = [{pipeline_mode = #tpu.pipeline_mode<synchronous>, transform_indices = @transform_0, window_bounds = array<i64: 16, 1>}, {pipeline_mode = #tpu.pipeline_mode<synchronous>, transform_indices = @transform_1, window_bounds = array<i64: 16, 32>}, {pipeline_mode = #tpu.pipeline_mode<synchronous>, transform_indices = @transform_2, window_bounds = array<i64: 16, 64>}, {pipeline_mode = #tpu.pipeline_mode<synchronous>, transform_indices = @transform_3, window_bounds = array<i64: 64, 64>}, {pipeline_mode = #tpu.pipeline_mode<synchronous>, transform_indices = @transform_4, window_bounds = array<i64: 2, 32>}, {pipeline_mode = #tpu.pipeline_mode<synchronous>, transform_indices = @transform_5, window_bounds = array<i64: 6, 32, 32>}, {pipeline_mode = #tpu.pipeline_mode<synchronous>, transform_indices = @transform_6, window_bounds = array<i64: 2, 32, 32>}, {pipeline_mode = #tpu.pipeline_mode<synchronous>, transform_indices = @transform_7, window_bounds = array<i64: 2, 32, 128>}, {pipeline_mode = #tpu.pipeline_mode<synchronous>, transform_indices = @transform_8, window_bounds = array<i64: 2, 128, 32>}, {pipeline_mode = #tpu.pipeline_mode<synchronous>, transform_indices = @transform_9, window_bounds = array<i64: 2, 10, 128>}, {pipeline_mode = #tpu.pipeline_mode<synchronous>, transform_indices = @transform_10, window_bounds = array<i64: 32, 5>}, {pipeline_mode = #tpu.pipeline_mode<synchronous>, transform_indices = @transform_11, window_bounds = array<i64: 1, 5>}, {pipeline_mode = #tpu.pipeline_mode<synchronous>, transform_indices = @transform_12, window_bounds = array<i64: 2, 5>}]} {
    %c0 = arith.constant 0 : index
    %c0_0 = arith.constant 0 : index
    %0 = vector.load %arg5[%c0, %c0_0] : memref<2x32xf32, #tpu.memory_space<vmem>>, vector<2x32xf32>
    %c0_1 = arith.constant 0 : index
    %c0_2 = arith.constant 0 : index
    %1 = vector.load %arg1[%c0_1, %c0_2] : memref<16x1xf32, #tpu.memory_space<vmem>>, vector<16x1xf32>
    %2 = vector.extract_strided_slice %0 {offsets = [0, 0], sizes = [1, 32], strides = [1, 1]} : vector<2x32xf32> to vector<1x32xf32>
    %3 = vector.broadcast %1 : vector<16x1xf32> to vector<16x32xf32>
    %4 = vector.broadcast %2 : vector<1x32xf32> to vector<16x32xf32>
    %5 = arith.mulf %3, %4 : vector<16x32xf32>
    %6 = vector.extract_strided_slice %0 {offsets = [1, 0], sizes = [1, 32], strides = [1, 1]} : vector<2x32xf32> to vector<1x32xf32>
    %7 = vector.broadcast %6 : vector<1x32xf32> to vector<16x32xf32>
    %8 = arith.addf %5, %7 : vector<16x32xf32>
    %c0_3 = arith.constant 0 : index
    %c0_4 = arith.constant 0 : index
    %9 = vector.load %arg2[%c0_3, %c0_4] : memref<16x32xf32, #tpu.memory_space<vmem>>, vector<16x32xf32>
    %10 = arith.addf %8, %9 : vector<16x32xf32>
    %c0_5 = arith.constant 0 : index
    %c0_6 = arith.constant 0 : index
    %11 = vector.load %arg3[%c0_5, %c0_6] : memref<16x64xf32, #tpu.memory_space<vmem>>, vector<16x64xf32>
    %c0_7 = arith.constant 0 : index
    %c0_8 = arith.constant 0 : index
    %12 = vector.load %arg4[%c0_7, %c0_8] : memref<64x64xf32, #tpu.memory_space<vmem>>, vector<64x64xf32>
    %13 = tpu.iota {dimensions = array<i32: 1>} : vector<16x32xi32>
    %c0_9 = arith.constant 0 : index
    %c0_10 = arith.constant 0 : index
    %c0_11 = arith.constant 0 : index
    %14 = vector.load %arg10[%c0_9, %c0_10, %c0_11] : memref<2x10x128xf32, #tpu.memory_space<vmem>>, vector<1x10x128xf32>
    %15 = vector.shape_cast %14 : vector<1x10x128xf32> to vector<10x128xf32>
    %c0_12 = arith.constant 0 : index
    %c0_13 = arith.constant 0 : index
    %c0_14 = arith.constant 0 : index
    %16 = vector.load %arg6[%c0_12, %c0_13, %c0_14] : memref<6x32x32xf32, #tpu.memory_space<vmem>>, vector<1x32x32xf32>
    %17 = vector.shape_cast %16 : vector<1x32x32xf32> to vector<32x32xf32>
    %cst = arith.constant dense<0.000000e+00> : vector<16x32xf32>
    %18 = tpu.matmul %10, %17, %cst {dimension_numbers = #tpu.dot_dimension_numbers<[1], [0], [0], [1], [0, 0, 1, 1], [], []>} : vector<16x32xf32>, vector<32x32xf32>, vector<16x32xf32> -> vector<16x32xf32>
    %19 = vector.extract_strided_slice %15 {offsets = [0, 0], sizes = [1, 32], strides = [1, 1]} : vector<10x128xf32> to vector<1x32xf32>
    %20 = vector.broadcast %19 : vector<1x32xf32> to vector<16x32xf32>
    %21 = arith.addf %18, %20 : vector<16x32xf32>
    %c1 = arith.constant 1 : index
    %c0_15 = arith.constant 0 : index
    %c0_16 = arith.constant 0 : index
    %22 = vector.load %arg6[%c1, %c0_15, %c0_16] : memref<6x32x32xf32, #tpu.memory_space<vmem>>, vector<1x32x32xf32>
    %23 = vector.shape_cast %22 : vector<1x32x32xf32> to vector<32x32xf32>
    %cst_17 = arith.constant dense<0.000000e+00> : vector<16x32xf32>
    %24 = tpu.matmul %10, %23, %cst_17 {dimension_numbers = #tpu.dot_dimension_numbers<[1], [0], [0], [1], [0, 0, 1, 1], [], []>} : vector<16x32xf32>, vector<32x32xf32>, vector<16x32xf32> -> vector<16x32xf32>
    %25 = vector.extract_strided_slice %15 {offsets = [1, 0], sizes = [1, 32], strides = [1, 1]} : vector<10x128xf32> to vector<1x32xf32>
    %26 = vector.broadcast %25 : vector<1x32xf32> to vector<16x32xf32>
    %27 = arith.addf %24, %26 : vector<16x32xf32>
    %c2 = arith.constant 2 : index
    %c0_18 = arith.constant 0 : index
    %c0_19 = arith.constant 0 : index
    %28 = vector.load %arg6[%c2, %c0_18, %c0_19] : memref<6x32x32xf32, #tpu.memory_space<vmem>>, vector<1x32x32xf32>
    %29 = vector.shape_cast %28 : vector<1x32x32xf32> to vector<32x32xf32>
    %cst_20 = arith.constant dense<0.000000e+00> : vector<16x32xf32>
    %30 = tpu.matmul %10, %29, %cst_20 {dimension_numbers = #tpu.dot_dimension_numbers<[1], [0], [0], [1], [0, 0, 1, 1], [], []>} : vector<16x32xf32>, vector<32x32xf32>, vector<16x32xf32> -> vector<16x32xf32>
    %31 = vector.extract_strided_slice %15 {offsets = [2, 0], sizes = [1, 32], strides = [1, 1]} : vector<10x128xf32> to vector<1x32xf32>
    %32 = vector.broadcast %31 : vector<1x32xf32> to vector<16x32xf32>
    %33 = arith.addf %30, %32 : vector<16x32xf32>
    %c0_i32 = arith.constant 0 : i32
    %34 = vector.broadcast %c0_i32 : i32 to vector<16x32xi32>
    %35 = arith.cmpi sge, %13, %34 : vector<16x32xi32>
    %c8_i32 = arith.constant 8 : i32
    %36 = vector.broadcast %c8_i32 : i32 to vector<16x32xi32>
    %37 = arith.cmpi slt, %13, %36 : vector<16x32xi32>
    %38 = arith.andi %35, %37 : vector<16x32xi1>
    %cst_21 = arith.constant 0.000000e+00 : f32
    %39 = vector.broadcast %cst_21 : f32 to vector<16x32xf32>
    %40 = arith.select %38, %27, %39 : vector<16x32xi1>, vector<16x32xf32>
    %cst_22 = arith.constant 0.000000e+00 : f32
    %41 = vector.broadcast %cst_22 : f32 to vector<16x32xf32>
    %42 = arith.select %38, %33, %41 : vector<16x32xi1>, vector<16x32xf32>
    %c8_i32_23 = arith.constant 8 : i32
    %43 = vector.broadcast %c8_i32_23 : i32 to vector<16x32xi32>
    %44 = arith.cmpi sge, %13, %43 : vector<16x32xi32>
    %c16_i32 = arith.constant 16 : i32
    %45 = vector.broadcast %c16_i32 : i32 to vector<16x32xi32>
    %46 = arith.cmpi slt, %13, %45 : vector<16x32xi32>
    %47 = arith.andi %44, %46 : vector<16x32xi1>
    %cst_24 = arith.constant 0.000000e+00 : f32
    %48 = vector.broadcast %cst_24 : f32 to vector<16x32xf32>
    %49 = arith.select %47, %27, %48 : vector<16x32xi1>, vector<16x32xf32>
    %cst_25 = arith.constant 0.000000e+00 : f32
    %50 = vector.broadcast %cst_25 : f32 to vector<16x32xf32>
    %51 = arith.select %47, %33, %50 : vector<16x32xi1>, vector<16x32xf32>
    %c16_i32_26 = arith.constant 16 : i32
    %52 = vector.broadcast %c16_i32_26 : i32 to vector<16x32xi32>
    %53 = arith.cmpi sge, %13, %52 : vector<16x32xi32>
    %c24_i32 = arith.constant 24 : i32
    %54 = vector.broadcast %c24_i32 : i32 to vector<16x32xi32>
    %55 = arith.cmpi slt, %13, %54 : vector<16x32xi32>
    %56 = arith.andi %53, %55 : vector<16x32xi1>
    %cst_27 = arith.constant 0.000000e+00 : f32
    %57 = vector.broadcast %cst_27 : f32 to vector<16x32xf32>
    %58 = arith.select %56, %27, %57 : vector<16x32xi1>, vector<16x32xf32>
    %cst_28 = arith.constant 0.000000e+00 : f32
    %59 = vector.broadcast %cst_28 : f32 to vector<16x32xf32>
    %60 = arith.select %56, %33, %59 : vector<16x32xi1>, vector<16x32xf32>
    %c24_i32_29 = arith.constant 24 : i32
    %61 = vector.broadcast %c24_i32_29 : i32 to vector<16x32xi32>
    %62 = arith.cmpi sge, %13, %61 : vector<16x32xi32>
    %c32_i32 = arith.constant 32 : i32
    %63 = vector.broadcast %c32_i32 : i32 to vector<16x32xi32>
    %64 = arith.cmpi slt, %13, %63 : vector<16x32xi32>
    %65 = arith.andi %62, %64 : vector<16x32xi1>
    %cst_30 = arith.constant 0.000000e+00 : f32
    %66 = vector.broadcast %cst_30 : f32 to vector<16x32xf32>
    %67 = arith.select %65, %27, %66 : vector<16x32xi1>, vector<16x32xf32>
    %cst_31 = arith.constant 0.000000e+00 : f32
    %68 = vector.broadcast %cst_31 : f32 to vector<16x32xf32>
    %69 = arith.select %65, %33, %68 : vector<16x32xi1>, vector<16x32xf32>
    %70 = tpu.concatenate %40, %49, %58, %67 in 0 : vector<16x32xf32>, vector<16x32xf32>, vector<16x32xf32>, vector<16x32xf32> -> vector<64x32xf32>
    %71 = tpu.concatenate %42, %51, %60, %69 in 0 : vector<16x32xf32>, vector<16x32xf32>, vector<16x32xf32>, vector<16x32xf32> -> vector<64x32xf32>
    %cst_32 = arith.constant dense<0.000000e+00> : vector<16x64xf32>
    %72 = tpu.matmul %21, %70, %cst_32 {dimension_numbers = #tpu.dot_dimension_numbers<[1], [1], [0], [0], [0, 0, 1, 0], [], []>} : vector<16x32xf32>, vector<64x32xf32>, vector<16x64xf32> -> vector<16x64xf32>
    %73 = arith.addf %72, %11 : vector<16x64xf32>
    %cst_33 = arith.constant dense<0xFF800000> : vector<16xf32>
    %74 = vector.multi_reduction <maximumf>, %73, %cst_33 [1] : vector<16x64xf32> to vector<16xf32>
    %75 = vector.shape_cast %74 : vector<16xf32> to vector<16x1xf32>
    %76 = vector.broadcast %75 : vector<16x1xf32> to vector<16x64xf32>
    %77 = arith.subf %73, %76 : vector<16x64xf32>
    %78 = math.exp %77 : vector<16x64xf32>
    %cst_34 = arith.constant dense<0.000000e+00> : vector<16x64xf32>
    %79 = tpu.matmul %78, %12, %cst_34 {dimension_numbers = #tpu.dot_dimension_numbers<[1], [0], [0], [1], [0, 0, 1, 1], [], []>} : vector<16x64xf32>, vector<64x64xf32>, vector<16x64xf32> -> vector<16x64xf32>
    %80 = arith.divf %78, %79 : vector<16x64xf32>
    %cst_35 = arith.constant dense<0.000000e+00> : vector<16x32xf32>
    %81 = tpu.matmul %80, %71, %cst_35 {dimension_numbers = #tpu.dot_dimension_numbers<[1], [0], [0], [1], [0, 0, 1, 1], [], []>} : vector<16x64xf32>, vector<64x32xf32>, vector<16x32xf32> -> vector<16x32xf32>
    %c0_36 = arith.constant 0 : index
    %c0_37 = arith.constant 0 : index
    %c0_38 = arith.constant 0 : index
    %82 = vector.load %arg7[%c0_36, %c0_37, %c0_38] : memref<2x32x32xf32, #tpu.memory_space<vmem>>, vector<1x32x32xf32>
    %83 = vector.shape_cast %82 : vector<1x32x32xf32> to vector<32x32xf32>
    %cst_39 = arith.constant dense<0.000000e+00> : vector<16x32xf32>
    %84 = tpu.matmul %81, %83, %cst_39 {dimension_numbers = #tpu.dot_dimension_numbers<[1], [0], [0], [1], [0, 0, 1, 1], [], []>} : vector<16x32xf32>, vector<32x32xf32>, vector<16x32xf32> -> vector<16x32xf32>
    %85 = vector.extract_strided_slice %15 {offsets = [3, 0], sizes = [1, 32], strides = [1, 1]} : vector<10x128xf32> to vector<1x32xf32>
    %86 = vector.broadcast %85 : vector<1x32xf32> to vector<16x32xf32>
    %87 = arith.addf %84, %86 : vector<16x32xf32>
    %88 = arith.addf %10, %87 : vector<16x32xf32>
    %89 = vector.extract_strided_slice %15 {offsets = [4, 0], sizes = [1, 32], strides = [1, 1]} : vector<10x128xf32> to vector<1x32xf32>
    %90 = vector.extract_strided_slice %15 {offsets = [5, 0], sizes = [1, 32], strides = [1, 1]} : vector<10x128xf32> to vector<1x32xf32>
    %cst_40 = arith.constant dense<0.000000e+00> : vector<16xf32>
    %91 = vector.multi_reduction <add>, %88, %cst_40 [1] : vector<16x32xf32> to vector<16xf32>
    %92 = vector.shape_cast %91 : vector<16xf32> to vector<16x1xf32>
    %cst_41 = arith.constant 3.200000e+01 : f32
    %93 = vector.broadcast %cst_41 : f32 to vector<16x1xf32>
    %94 = arith.divf %92, %93 : vector<16x1xf32>
    %95 = vector.broadcast %94 : vector<16x1xf32> to vector<16x32xf32>
    %96 = arith.subf %88, %95 : vector<16x32xf32>
    %97 = arith.mulf %96, %96 : vector<16x32xf32>
    %cst_42 = arith.constant dense<0.000000e+00> : vector<16xf32>
    %98 = vector.multi_reduction <add>, %97, %cst_42 [1] : vector<16x32xf32> to vector<16xf32>
    %99 = vector.shape_cast %98 : vector<16xf32> to vector<16x1xf32>
    %cst_43 = arith.constant 3.200000e+01 : f32
    %100 = vector.broadcast %cst_43 : f32 to vector<16x1xf32>
    %101 = arith.divf %99, %100 : vector<16x1xf32>
    %102 = vector.broadcast %94 : vector<16x1xf32> to vector<16x32xf32>
    %103 = arith.subf %88, %102 : vector<16x32xf32>
    %cst_44 = arith.constant 9.99999974E-6 : f32
    %104 = vector.broadcast %cst_44 : f32 to vector<16x1xf32>
    %105 = arith.addf %101, %104 : vector<16x1xf32>
    %106 = math.rsqrt %105 : vector<16x1xf32>
    %107 = vector.broadcast %106 : vector<16x1xf32> to vector<16x32xf32>
    %108 = arith.mulf %103, %107 : vector<16x32xf32>
    %109 = vector.broadcast %89 : vector<1x32xf32> to vector<16x32xf32>
    %110 = arith.mulf %108, %109 : vector<16x32xf32>
    %111 = vector.broadcast %90 : vector<1x32xf32> to vector<16x32xf32>
    %112 = arith.addf %110, %111 : vector<16x32xf32>
    %c0_45 = arith.constant 0 : index
    %c0_46 = arith.constant 0 : index
    %c0_47 = arith.constant 0 : index
    %113 = vector.load %arg8[%c0_45, %c0_46, %c0_47] : memref<2x32x128xf32, #tpu.memory_space<vmem>>, vector<1x32x128xf32>
    %114 = vector.shape_cast %113 : vector<1x32x128xf32> to vector<32x128xf32>
    %cst_48 = arith.constant dense<0.000000e+00> : vector<16x128xf32>
    %115 = tpu.matmul %112, %114, %cst_48 {dimension_numbers = #tpu.dot_dimension_numbers<[1], [0], [0], [1], [0, 0, 1, 1], [], []>} : vector<16x32xf32>, vector<32x128xf32>, vector<16x128xf32> -> vector<16x128xf32>
    %116 = vector.extract_strided_slice %15 {offsets = [6, 0], sizes = [1, 128], strides = [1, 1]} : vector<10x128xf32> to vector<1x128xf32>
    %117 = vector.broadcast %116 : vector<1x128xf32> to vector<16x128xf32>
    %118 = arith.addf %115, %117 : vector<16x128xf32>
    %cst_49 = arith.constant 0.000000e+00 : f32
    %119 = vector.broadcast %cst_49 : f32 to vector<16x128xf32>
    %120 = arith.maximumf %118, %119 : vector<16x128xf32>
    %c0_50 = arith.constant 0 : index
    %c0_51 = arith.constant 0 : index
    %c0_52 = arith.constant 0 : index
    %121 = vector.load %arg9[%c0_50, %c0_51, %c0_52] : memref<2x128x32xf32, #tpu.memory_space<vmem>>, vector<1x128x32xf32>
    %122 = vector.shape_cast %121 : vector<1x128x32xf32> to vector<128x32xf32>
    %cst_53 = arith.constant dense<0.000000e+00> : vector<16x32xf32>
    %123 = tpu.matmul %120, %122, %cst_53 {dimension_numbers = #tpu.dot_dimension_numbers<[1], [0], [0], [1], [0, 0, 1, 1], [], []>} : vector<16x128xf32>, vector<128x32xf32>, vector<16x32xf32> -> vector<16x32xf32>
    %124 = vector.extract_strided_slice %15 {offsets = [7, 0], sizes = [1, 32], strides = [1, 1]} : vector<10x128xf32> to vector<1x32xf32>
    %125 = vector.broadcast %124 : vector<1x32xf32> to vector<16x32xf32>
    %126 = arith.addf %123, %125 : vector<16x32xf32>
    %127 = arith.addf %112, %126 : vector<16x32xf32>
    %128 = vector.extract_strided_slice %15 {offsets = [8, 0], sizes = [1, 32], strides = [1, 1]} : vector<10x128xf32> to vector<1x32xf32>
    %129 = vector.extract_strided_slice %15 {offsets = [9, 0], sizes = [1, 32], strides = [1, 1]} : vector<10x128xf32> to vector<1x32xf32>
    %cst_54 = arith.constant dense<0.000000e+00> : vector<16xf32>
    %130 = vector.multi_reduction <add>, %127, %cst_54 [1] : vector<16x32xf32> to vector<16xf32>
    %131 = vector.shape_cast %130 : vector<16xf32> to vector<16x1xf32>
    %cst_55 = arith.constant 3.200000e+01 : f32
    %132 = vector.broadcast %cst_55 : f32 to vector<16x1xf32>
    %133 = arith.divf %131, %132 : vector<16x1xf32>
    %134 = vector.broadcast %133 : vector<16x1xf32> to vector<16x32xf32>
    %135 = arith.subf %127, %134 : vector<16x32xf32>
    %136 = arith.mulf %135, %135 : vector<16x32xf32>
    %cst_56 = arith.constant dense<0.000000e+00> : vector<16xf32>
    %137 = vector.multi_reduction <add>, %136, %cst_56 [1] : vector<16x32xf32> to vector<16xf32>
    %138 = vector.shape_cast %137 : vector<16xf32> to vector<16x1xf32>
    %cst_57 = arith.constant 3.200000e+01 : f32
    %139 = vector.broadcast %cst_57 : f32 to vector<16x1xf32>
    %140 = arith.divf %138, %139 : vector<16x1xf32>
    %141 = vector.broadcast %133 : vector<16x1xf32> to vector<16x32xf32>
    %142 = arith.subf %127, %141 : vector<16x32xf32>
    %cst_58 = arith.constant 9.99999974E-6 : f32
    %143 = vector.broadcast %cst_58 : f32 to vector<16x1xf32>
    %144 = arith.addf %140, %143 : vector<16x1xf32>
    %145 = math.rsqrt %144 : vector<16x1xf32>
    %146 = vector.broadcast %145 : vector<16x1xf32> to vector<16x32xf32>
    %147 = arith.mulf %142, %146 : vector<16x32xf32>
    %148 = vector.broadcast %128 : vector<1x32xf32> to vector<16x32xf32>
    %149 = arith.mulf %147, %148 : vector<16x32xf32>
    %150 = vector.broadcast %129 : vector<1x32xf32> to vector<16x32xf32>
    %151 = arith.addf %149, %150 : vector<16x32xf32>
    %c1_59 = arith.constant 1 : index
    %c0_60 = arith.constant 0 : index
    %c0_61 = arith.constant 0 : index
    %152 = vector.load %arg10[%c1_59, %c0_60, %c0_61] : memref<2x10x128xf32, #tpu.memory_space<vmem>>, vector<1x10x128xf32>
    %153 = vector.shape_cast %152 : vector<1x10x128xf32> to vector<10x128xf32>
    %c3 = arith.constant 3 : index
    %c0_62 = arith.constant 0 : index
    %c0_63 = arith.constant 0 : index
    %154 = vector.load %arg6[%c3, %c0_62, %c0_63] : memref<6x32x32xf32, #tpu.memory_space<vmem>>, vector<1x32x32xf32>
    %155 = vector.shape_cast %154 : vector<1x32x32xf32> to vector<32x32xf32>
    %cst_64 = arith.constant dense<0.000000e+00> : vector<16x32xf32>
    %156 = tpu.matmul %151, %155, %cst_64 {dimension_numbers = #tpu.dot_dimension_numbers<[1], [0], [0], [1], [0, 0, 1, 1], [], []>} : vector<16x32xf32>, vector<32x32xf32>, vector<16x32xf32> -> vector<16x32xf32>
    %157 = vector.extract_strided_slice %153 {offsets = [0, 0], sizes = [1, 32], strides = [1, 1]} : vector<10x128xf32> to vector<1x32xf32>
    %158 = vector.broadcast %157 : vector<1x32xf32> to vector<16x32xf32>
    %159 = arith.addf %156, %158 : vector<16x32xf32>
    %c4 = arith.constant 4 : index
    %c0_65 = arith.constant 0 : index
    %c0_66 = arith.constant 0 : index
    %160 = vector.load %arg6[%c4, %c0_65, %c0_66] : memref<6x32x32xf32, #tpu.memory_space<vmem>>, vector<1x32x32xf32>
    %161 = vector.shape_cast %160 : vector<1x32x32xf32> to vector<32x32xf32>
    %cst_67 = arith.constant dense<0.000000e+00> : vector<16x32xf32>
    %162 = tpu.matmul %151, %161, %cst_67 {dimension_numbers = #tpu.dot_dimension_numbers<[1], [0], [0], [1], [0, 0, 1, 1], [], []>} : vector<16x32xf32>, vector<32x32xf32>, vector<16x32xf32> -> vector<16x32xf32>
    %163 = vector.extract_strided_slice %153 {offsets = [1, 0], sizes = [1, 32], strides = [1, 1]} : vector<10x128xf32> to vector<1x32xf32>
    %164 = vector.broadcast %163 : vector<1x32xf32> to vector<16x32xf32>
    %165 = arith.addf %162, %164 : vector<16x32xf32>
    %c5 = arith.constant 5 : index
    %c0_68 = arith.constant 0 : index
    %c0_69 = arith.constant 0 : index
    %166 = vector.load %arg6[%c5, %c0_68, %c0_69] : memref<6x32x32xf32, #tpu.memory_space<vmem>>, vector<1x32x32xf32>
    %167 = vector.shape_cast %166 : vector<1x32x32xf32> to vector<32x32xf32>
    %cst_70 = arith.constant dense<0.000000e+00> : vector<16x32xf32>
    %168 = tpu.matmul %151, %167, %cst_70 {dimension_numbers = #tpu.dot_dimension_numbers<[1], [0], [0], [1], [0, 0, 1, 1], [], []>} : vector<16x32xf32>, vector<32x32xf32>, vector<16x32xf32> -> vector<16x32xf32>
    %169 = vector.extract_strided_slice %153 {offsets = [2, 0], sizes = [1, 32], strides = [1, 1]} : vector<10x128xf32> to vector<1x32xf32>
    %170 = vector.broadcast %169 : vector<1x32xf32> to vector<16x32xf32>
    %171 = arith.addf %168, %170 : vector<16x32xf32>
    %c0_i32_71 = arith.constant 0 : i32
    %172 = vector.broadcast %c0_i32_71 : i32 to vector<16x32xi32>
    %173 = arith.cmpi sge, %13, %172 : vector<16x32xi32>
    %c8_i32_72 = arith.constant 8 : i32
    %174 = vector.broadcast %c8_i32_72 : i32 to vector<16x32xi32>
    %175 = arith.cmpi slt, %13, %174 : vector<16x32xi32>
    %176 = arith.andi %173, %175 : vector<16x32xi1>
    %cst_73 = arith.constant 0.000000e+00 : f32
    %177 = vector.broadcast %cst_73 : f32 to vector<16x32xf32>
    %178 = arith.select %176, %165, %177 : vector<16x32xi1>, vector<16x32xf32>
    %cst_74 = arith.constant 0.000000e+00 : f32
    %179 = vector.broadcast %cst_74 : f32 to vector<16x32xf32>
    %180 = arith.select %176, %171, %179 : vector<16x32xi1>, vector<16x32xf32>
    %c8_i32_75 = arith.constant 8 : i32
    %181 = vector.broadcast %c8_i32_75 : i32 to vector<16x32xi32>
    %182 = arith.cmpi sge, %13, %181 : vector<16x32xi32>
    %c16_i32_76 = arith.constant 16 : i32
    %183 = vector.broadcast %c16_i32_76 : i32 to vector<16x32xi32>
    %184 = arith.cmpi slt, %13, %183 : vector<16x32xi32>
    %185 = arith.andi %182, %184 : vector<16x32xi1>
    %cst_77 = arith.constant 0.000000e+00 : f32
    %186 = vector.broadcast %cst_77 : f32 to vector<16x32xf32>
    %187 = arith.select %185, %165, %186 : vector<16x32xi1>, vector<16x32xf32>
    %cst_78 = arith.constant 0.000000e+00 : f32
    %188 = vector.broadcast %cst_78 : f32 to vector<16x32xf32>
    %189 = arith.select %185, %171, %188 : vector<16x32xi1>, vector<16x32xf32>
    %c16_i32_79 = arith.constant 16 : i32
    %190 = vector.broadcast %c16_i32_79 : i32 to vector<16x32xi32>
    %191 = arith.cmpi sge, %13, %190 : vector<16x32xi32>
    %c24_i32_80 = arith.constant 24 : i32
    %192 = vector.broadcast %c24_i32_80 : i32 to vector<16x32xi32>
    %193 = arith.cmpi slt, %13, %192 : vector<16x32xi32>
    %194 = arith.andi %191, %193 : vector<16x32xi1>
    %cst_81 = arith.constant 0.000000e+00 : f32
    %195 = vector.broadcast %cst_81 : f32 to vector<16x32xf32>
    %196 = arith.select %194, %165, %195 : vector<16x32xi1>, vector<16x32xf32>
    %cst_82 = arith.constant 0.000000e+00 : f32
    %197 = vector.broadcast %cst_82 : f32 to vector<16x32xf32>
    %198 = arith.select %194, %171, %197 : vector<16x32xi1>, vector<16x32xf32>
    %c24_i32_83 = arith.constant 24 : i32
    %199 = vector.broadcast %c24_i32_83 : i32 to vector<16x32xi32>
    %200 = arith.cmpi sge, %13, %199 : vector<16x32xi32>
    %c32_i32_84 = arith.constant 32 : i32
    %201 = vector.broadcast %c32_i32_84 : i32 to vector<16x32xi32>
    %202 = arith.cmpi slt, %13, %201 : vector<16x32xi32>
    %203 = arith.andi %200, %202 : vector<16x32xi1>
    %cst_85 = arith.constant 0.000000e+00 : f32
    %204 = vector.broadcast %cst_85 : f32 to vector<16x32xf32>
    %205 = arith.select %203, %165, %204 : vector<16x32xi1>, vector<16x32xf32>
    %cst_86 = arith.constant 0.000000e+00 : f32
    %206 = vector.broadcast %cst_86 : f32 to vector<16x32xf32>
    %207 = arith.select %203, %171, %206 : vector<16x32xi1>, vector<16x32xf32>
    %208 = tpu.concatenate %178, %187, %196, %205 in 0 : vector<16x32xf32>, vector<16x32xf32>, vector<16x32xf32>, vector<16x32xf32> -> vector<64x32xf32>
    %209 = tpu.concatenate %180, %189, %198, %207 in 0 : vector<16x32xf32>, vector<16x32xf32>, vector<16x32xf32>, vector<16x32xf32> -> vector<64x32xf32>
    %cst_87 = arith.constant dense<0.000000e+00> : vector<16x64xf32>
    %210 = tpu.matmul %159, %208, %cst_87 {dimension_numbers = #tpu.dot_dimension_numbers<[1], [1], [0], [0], [0, 0, 1, 0], [], []>} : vector<16x32xf32>, vector<64x32xf32>, vector<16x64xf32> -> vector<16x64xf32>
    %211 = arith.addf %210, %11 : vector<16x64xf32>
    %cst_88 = arith.constant dense<0xFF800000> : vector<16xf32>
    %212 = vector.multi_reduction <maximumf>, %211, %cst_88 [1] : vector<16x64xf32> to vector<16xf32>
    %213 = vector.shape_cast %212 : vector<16xf32> to vector<16x1xf32>
    %214 = vector.broadcast %213 : vector<16x1xf32> to vector<16x64xf32>
    %215 = arith.subf %211, %214 : vector<16x64xf32>
    %216 = math.exp %215 : vector<16x64xf32>
    %cst_89 = arith.constant dense<0.000000e+00> : vector<16x64xf32>
    %217 = tpu.matmul %216, %12, %cst_89 {dimension_numbers = #tpu.dot_dimension_numbers<[1], [0], [0], [1], [0, 0, 1, 1], [], []>} : vector<16x64xf32>, vector<64x64xf32>, vector<16x64xf32> -> vector<16x64xf32>
    %218 = arith.divf %216, %217 : vector<16x64xf32>
    %cst_90 = arith.constant dense<0.000000e+00> : vector<16x32xf32>
    %219 = tpu.matmul %218, %209, %cst_90 {dimension_numbers = #tpu.dot_dimension_numbers<[1], [0], [0], [1], [0, 0, 1, 1], [], []>} : vector<16x64xf32>, vector<64x32xf32>, vector<16x32xf32> -> vector<16x32xf32>
    %c1_91 = arith.constant 1 : index
    %c0_92 = arith.constant 0 : index
    %c0_93 = arith.constant 0 : index
    %220 = vector.load %arg7[%c1_91, %c0_92, %c0_93] : memref<2x32x32xf32, #tpu.memory_space<vmem>>, vector<1x32x32xf32>
    %221 = vector.shape_cast %220 : vector<1x32x32xf32> to vector<32x32xf32>
    %cst_94 = arith.constant dense<0.000000e+00> : vector<16x32xf32>
    %222 = tpu.matmul %219, %221, %cst_94 {dimension_numbers = #tpu.dot_dimension_numbers<[1], [0], [0], [1], [0, 0, 1, 1], [], []>} : vector<16x32xf32>, vector<32x32xf32>, vector<16x32xf32> -> vector<16x32xf32>
    %223 = vector.extract_strided_slice %153 {offsets = [3, 0], sizes = [1, 32], strides = [1, 1]} : vector<10x128xf32> to vector<1x32xf32>
    %224 = vector.broadcast %223 : vector<1x32xf32> to vector<16x32xf32>
    %225 = arith.addf %222, %224 : vector<16x32xf32>
    %226 = arith.addf %151, %225 : vector<16x32xf32>
    %227 = vector.extract_strided_slice %153 {offsets = [4, 0], sizes = [1, 32], strides = [1, 1]} : vector<10x128xf32> to vector<1x32xf32>
    %228 = vector.extract_strided_slice %153 {offsets = [5, 0], sizes = [1, 32], strides = [1, 1]} : vector<10x128xf32> to vector<1x32xf32>
    %cst_95 = arith.constant dense<0.000000e+00> : vector<16xf32>
    %229 = vector.multi_reduction <add>, %226, %cst_95 [1] : vector<16x32xf32> to vector<16xf32>
    %230 = vector.shape_cast %229 : vector<16xf32> to vector<16x1xf32>
    %cst_96 = arith.constant 3.200000e+01 : f32
    %231 = vector.broadcast %cst_96 : f32 to vector<16x1xf32>
    %232 = arith.divf %230, %231 : vector<16x1xf32>
    %233 = vector.broadcast %232 : vector<16x1xf32> to vector<16x32xf32>
    %234 = arith.subf %226, %233 : vector<16x32xf32>
    %235 = arith.mulf %234, %234 : vector<16x32xf32>
    %cst_97 = arith.constant dense<0.000000e+00> : vector<16xf32>
    %236 = vector.multi_reduction <add>, %235, %cst_97 [1] : vector<16x32xf32> to vector<16xf32>
    %237 = vector.shape_cast %236 : vector<16xf32> to vector<16x1xf32>
    %cst_98 = arith.constant 3.200000e+01 : f32
    %238 = vector.broadcast %cst_98 : f32 to vector<16x1xf32>
    %239 = arith.divf %237, %238 : vector<16x1xf32>
    %240 = vector.broadcast %232 : vector<16x1xf32> to vector<16x32xf32>
    %241 = arith.subf %226, %240 : vector<16x32xf32>
    %cst_99 = arith.constant 9.99999974E-6 : f32
    %242 = vector.broadcast %cst_99 : f32 to vector<16x1xf32>
    %243 = arith.addf %239, %242 : vector<16x1xf32>
    %244 = math.rsqrt %243 : vector<16x1xf32>
    %245 = vector.broadcast %244 : vector<16x1xf32> to vector<16x32xf32>
    %246 = arith.mulf %241, %245 : vector<16x32xf32>
    %247 = vector.broadcast %227 : vector<1x32xf32> to vector<16x32xf32>
    %248 = arith.mulf %246, %247 : vector<16x32xf32>
    %249 = vector.broadcast %228 : vector<1x32xf32> to vector<16x32xf32>
    %250 = arith.addf %248, %249 : vector<16x32xf32>
    %c1_100 = arith.constant 1 : index
    %c0_101 = arith.constant 0 : index
    %c0_102 = arith.constant 0 : index
    %251 = vector.load %arg8[%c1_100, %c0_101, %c0_102] : memref<2x32x128xf32, #tpu.memory_space<vmem>>, vector<1x32x128xf32>
    %252 = vector.shape_cast %251 : vector<1x32x128xf32> to vector<32x128xf32>
    %cst_103 = arith.constant dense<0.000000e+00> : vector<16x128xf32>
    %253 = tpu.matmul %250, %252, %cst_103 {dimension_numbers = #tpu.dot_dimension_numbers<[1], [0], [0], [1], [0, 0, 1, 1], [], []>} : vector<16x32xf32>, vector<32x128xf32>, vector<16x128xf32> -> vector<16x128xf32>
    %254 = vector.extract_strided_slice %153 {offsets = [6, 0], sizes = [1, 128], strides = [1, 1]} : vector<10x128xf32> to vector<1x128xf32>
    %255 = vector.broadcast %254 : vector<1x128xf32> to vector<16x128xf32>
    %256 = arith.addf %253, %255 : vector<16x128xf32>
    %cst_104 = arith.constant 0.000000e+00 : f32
    %257 = vector.broadcast %cst_104 : f32 to vector<16x128xf32>
    %258 = arith.maximumf %256, %257 : vector<16x128xf32>
    %c1_105 = arith.constant 1 : index
    %c0_106 = arith.constant 0 : index
    %c0_107 = arith.constant 0 : index
    %259 = vector.load %arg9[%c1_105, %c0_106, %c0_107] : memref<2x128x32xf32, #tpu.memory_space<vmem>>, vector<1x128x32xf32>
    %260 = vector.shape_cast %259 : vector<1x128x32xf32> to vector<128x32xf32>
    %cst_108 = arith.constant dense<0.000000e+00> : vector<16x32xf32>
    %261 = tpu.matmul %258, %260, %cst_108 {dimension_numbers = #tpu.dot_dimension_numbers<[1], [0], [0], [1], [0, 0, 1, 1], [], []>} : vector<16x128xf32>, vector<128x32xf32>, vector<16x32xf32> -> vector<16x32xf32>
    %262 = vector.extract_strided_slice %153 {offsets = [7, 0], sizes = [1, 32], strides = [1, 1]} : vector<10x128xf32> to vector<1x32xf32>
    %263 = vector.broadcast %262 : vector<1x32xf32> to vector<16x32xf32>
    %264 = arith.addf %261, %263 : vector<16x32xf32>
    %265 = arith.addf %250, %264 : vector<16x32xf32>
    %266 = vector.extract_strided_slice %153 {offsets = [8, 0], sizes = [1, 32], strides = [1, 1]} : vector<10x128xf32> to vector<1x32xf32>
    %267 = vector.extract_strided_slice %153 {offsets = [9, 0], sizes = [1, 32], strides = [1, 1]} : vector<10x128xf32> to vector<1x32xf32>
    %cst_109 = arith.constant dense<0.000000e+00> : vector<16xf32>
    %268 = vector.multi_reduction <add>, %265, %cst_109 [1] : vector<16x32xf32> to vector<16xf32>
    %269 = vector.shape_cast %268 : vector<16xf32> to vector<16x1xf32>
    %cst_110 = arith.constant 3.200000e+01 : f32
    %270 = vector.broadcast %cst_110 : f32 to vector<16x1xf32>
    %271 = arith.divf %269, %270 : vector<16x1xf32>
    %272 = vector.broadcast %271 : vector<16x1xf32> to vector<16x32xf32>
    %273 = arith.subf %265, %272 : vector<16x32xf32>
    %274 = arith.mulf %273, %273 : vector<16x32xf32>
    %cst_111 = arith.constant dense<0.000000e+00> : vector<16xf32>
    %275 = vector.multi_reduction <add>, %274, %cst_111 [1] : vector<16x32xf32> to vector<16xf32>
    %276 = vector.shape_cast %275 : vector<16xf32> to vector<16x1xf32>
    %cst_112 = arith.constant 3.200000e+01 : f32
    %277 = vector.broadcast %cst_112 : f32 to vector<16x1xf32>
    %278 = arith.divf %276, %277 : vector<16x1xf32>
    %279 = vector.broadcast %271 : vector<16x1xf32> to vector<16x32xf32>
    %280 = arith.subf %265, %279 : vector<16x32xf32>
    %cst_113 = arith.constant 9.99999974E-6 : f32
    %281 = vector.broadcast %cst_113 : f32 to vector<16x1xf32>
    %282 = arith.addf %278, %281 : vector<16x1xf32>
    %283 = math.rsqrt %282 : vector<16x1xf32>
    %284 = vector.broadcast %283 : vector<16x1xf32> to vector<16x32xf32>
    %285 = arith.mulf %280, %284 : vector<16x32xf32>
    %286 = vector.broadcast %266 : vector<1x32xf32> to vector<16x32xf32>
    %287 = arith.mulf %285, %286 : vector<16x32xf32>
    %288 = vector.broadcast %267 : vector<1x32xf32> to vector<16x32xf32>
    %289 = arith.addf %287, %288 : vector<16x32xf32>
    %290 = tpu.iota {dimensions = array<i32: 0>} : vector<2x16xi32>
    %291 = tpu.iota {dimensions = array<i32: 1>} : vector<2x16xi32>
    %c8_i32_114 = arith.constant 8 : i32
    %292 = vector.broadcast %c8_i32_114 : i32 to vector<2x16xi32>
    %293 = arith.muli %290, %292 : vector<2x16xi32>
    %c7_i32 = arith.constant 7 : i32
    %294 = vector.broadcast %c7_i32 : i32 to vector<2x16xi32>
    %295 = arith.addi %293, %294 : vector<2x16xi32>
    %296 = arith.cmpi eq, %291, %295 : vector<2x16xi32>
    %297 = arith.extui %296 : vector<2x16xi1> to vector<2x16xi32>
    %298 = arith.sitofp %297 : vector<2x16xi32> to vector<2x16xf32>
    %cst_115 = arith.constant dense<0.000000e+00> : vector<2x32xf32>
    %299 = tpu.matmul %298, %289, %cst_115 {dimension_numbers = #tpu.dot_dimension_numbers<[1], [0], [0], [1], [0, 0, 1, 1], [], []>} : vector<2x16xf32>, vector<16x32xf32>, vector<2x32xf32> -> vector<2x32xf32>
    %c0_116 = arith.constant 0 : index
    %c0_117 = arith.constant 0 : index
    %300 = vector.load %arg11[%c0_116, %c0_117] : memref<32x5xf32, #tpu.memory_space<vmem>>, vector<32x5xf32>
    %cst_118 = arith.constant dense<0.000000e+00> : vector<2x5xf32>
    %301 = tpu.matmul %299, %300, %cst_118 {dimension_numbers = #tpu.dot_dimension_numbers<[1], [0], [0], [1], [0, 0, 1, 1], [], []>} : vector<2x32xf32>, vector<32x5xf32>, vector<2x5xf32> -> vector<2x5xf32>
    %c0_119 = arith.constant 0 : index
    %c0_120 = arith.constant 0 : index
    %302 = vector.load %arg12[%c0_119, %c0_120] : memref<1x5xf32, #tpu.memory_space<vmem>>, vector<1x5xf32>
    %303 = vector.broadcast %302 : vector<1x5xf32> to vector<2x5xf32>
    %304 = arith.addf %301, %303 : vector<2x5xf32>
    %c0_121 = arith.constant 0 : index
    %c0_122 = arith.constant 0 : index
    %305 = vector.load %arg13[%c0_121, %c0_122] : memref<2x5xf32, #tpu.memory_space<vmem>>, vector<2x5xf32>
    tpu.vector_store %arg13[%c0_121, %c0_122], %304 {strides = array<i32>} : memref<2x5xf32, #tpu.memory_space<vmem>>, vector<2x5xf32>,
    return
  }
  func.func @transform_0(%arg0: i32) -> (i32, i32) {
    %c0_i32 = arith.constant 0 : i32
    %c0_i32_0 = arith.constant 0 : i32
    %c0_i32_1 = arith.constant 0 : i32
    return %c0_i32, %c0_i32_0 : i32, i32
  }
  func.func @transform_1(%arg0: i32) -> (i32, i32) {
    %c0_i32 = arith.constant 0 : i32
    %c0_i32_0 = arith.constant 0 : i32
    %c0_i32_1 = arith.constant 0 : i32
    return %c0_i32, %c0_i32_0 : i32, i32
  }
  func.func @transform_2(%arg0: i32) -> (i32, i32) {
    %c0_i32 = arith.constant 0 : i32
    %c0_i32_0 = arith.constant 0 : i32
    %c0_i32_1 = arith.constant 0 : i32
    return %c0_i32, %c0_i32_0 : i32, i32
  }
  func.func @transform_3(%arg0: i32) -> (i32, i32) {
    %c0_i32 = arith.constant 0 : i32
    %c0_i32_0 = arith.constant 0 : i32
    %c0_i32_1 = arith.constant 0 : i32
    return %c0_i32, %c0_i32_0 : i32, i32
  }
  func.func @transform_4(%arg0: i32) -> (i32, i32) {
    %c0_i32 = arith.constant 0 : i32
    %c0_i32_0 = arith.constant 0 : i32
    %c0_i32_1 = arith.constant 0 : i32
    return %c0_i32, %c0_i32_0 : i32, i32
  }
  func.func @transform_5(%arg0: i32) -> (i32, i32, i32) {
    %c0_i32 = arith.constant 0 : i32
    %c0_i32_0 = arith.constant 0 : i32
    %c0_i32_1 = arith.constant 0 : i32
    %c0_i32_2 = arith.constant 0 : i32
    return %c0_i32, %c0_i32_0, %c0_i32_1 : i32, i32, i32
  }
  func.func @transform_6(%arg0: i32) -> (i32, i32, i32) {
    %c0_i32 = arith.constant 0 : i32
    %c0_i32_0 = arith.constant 0 : i32
    %c0_i32_1 = arith.constant 0 : i32
    %c0_i32_2 = arith.constant 0 : i32
    return %c0_i32, %c0_i32_0, %c0_i32_1 : i32, i32, i32
  }
  func.func @transform_7(%arg0: i32) -> (i32, i32, i32) {
    %c0_i32 = arith.constant 0 : i32
    %c0_i32_0 = arith.constant 0 : i32
    %c0_i32_1 = arith.constant 0 : i32
    %c0_i32_2 = arith.constant 0 : i32
    return %c0_i32, %c0_i32_0, %c0_i32_1 : i32, i32, i32
  }
  func.func @transform_8(%arg0: i32) -> (i32, i32, i32) {
    %c0_i32 = arith.constant 0 : i32
    %c0_i32_0 = arith.constant 0 : i32
    %c0_i32_1 = arith.constant 0 : i32
    %c0_i32_2 = arith.constant 0 : i32
    return %c0_i32, %c0_i32_0, %c0_i32_1 : i32, i32, i32
  }
  func.func @transform_9(%arg0: i32) -> (i32, i32, i32) {
    %c0_i32 = arith.constant 0 : i32
    %c0_i32_0 = arith.constant 0 : i32
    %c0_i32_1 = arith.constant 0 : i32
    %c0_i32_2 = arith.constant 0 : i32
    return %c0_i32, %c0_i32_0, %c0_i32_1 : i32, i32, i32
  }
  func.func @transform_10(%arg0: i32) -> (i32, i32) {
    %c0_i32 = arith.constant 0 : i32
    %c0_i32_0 = arith.constant 0 : i32
    %c0_i32_1 = arith.constant 0 : i32
    return %c0_i32, %c0_i32_0 : i32, i32
  }
  func.func @transform_11(%arg0: i32) -> (i32, i32) {
    %c0_i32 = arith.constant 0 : i32
    %c0_i32_0 = arith.constant 0 : i32
    %c0_i32_1 = arith.constant 0 : i32
    return %c0_i32, %c0_i32_0 : i32, i32
  }
  func.func @transform_12(%arg0: i32) -> (i32, i32) {
    %c0_i32 = arith.constant 0 : i32
    %c0_i32_0 = arith.constant 0 : i32
    %c0_i32_1 = arith.constant 0 : i32
    return %c0_i32, %c0_i32_0 : i32, i32
  }
}

</mosaic_0001>

<llo_original>
// kernel: tile.13
$region0: #{tile.13}
  #allocation0 [shape = 's32[1]{0}', space=sflag, size = 0x4, scoped, tag = 'scoped memory for tile.13']
  %s0 = inlined_call_operand.vmem [shape: f32[8], index: 0, kind: input, shape index: {}]
  %s1 = inlined_call_operand.vmem [shape: f32[2,8], index: 1, kind: output, shape index: {}]
  // Predicated region
  $region2: #{tile.13} parent=0 // pred_check
    _
  $region3: #{tile.13} parent=0 // pred_check_branch
    %3 = sbr.rel (0) target = $region5
  $region4: #{tile.13} parent=0 // pred_region
    _
  $region5: #{tile.13} parent=0 // pred_fallthru
    _
  %v4 = vld [vmem:[%s0] ss:$0 sm:$0xff]
  %5 = vst [vmem:[%s1] sm:$0x3] %v4

// kernel: tile.19
$region0: #{tile.19}
  %s0 = inlined_call_operand.vmem [shape: f32[16,4,16], index: 0, kind: input, shape index: {}]
  %s1 = inlined_call_operand.vmem [shape: f32[16,64], index: 1, kind: output, shape index: {}]
  $region1: #{tile.19} parent=0
    #allocation0 [shape = 'u8[65536]{0}', space=vmem, size = 0x10000, scoped, tag = 'scoped mem for input reshape']
    %s3 = sshllo.u32 0, 4
    %s4 = smul.addr 4, 15
    %s5 = scalar_lea.vmem %s0, %s4
    %v6 = vld [vmem:[%s5] sm:%s3]
    %s7 = scalar_lea.vmem [#allocation0], 120
    %8 = vst [vmem:[%s7] sm:%s3] %v6
    %s9 = smul.addr 4, 14
    %s10 = scalar_lea.vmem %s0, %s9
    %v11 = vld [vmem:[%s10] sm:%s3]
    %s12 = scalar_lea.vmem [#allocation0], 112
    %13 = vst [vmem:[%s12] sm:%s3] %v11
    %s14 = smul.addr 4, 13
    %s15 = scalar_lea.vmem %s0, %s14
    %v16 = vld [vmem:[%s15] sm:%s3]
    %s17 = scalar_lea.vmem [#allocation0], 104
    %18 = vst [vmem:[%s17] sm:%s3] %v16
    %s19 = smul.addr 4, 12
    %s20 = scalar_lea.vmem %s0, %s19
    %v21 = vld [vmem:[%s20] sm:%s3]
    %s22 = scalar_lea.vmem [#allocation0], 96
    %23 = vst [vmem:[%s22] sm:%s3] %v21
    %s24 = smul.addr 4, 11
    %s25 = scalar_lea.vmem %s0, %s24
    %v26 = vld [vmem:[%s25] sm:%s3]
    %s27 = scalar_lea.vmem [#allocation0], 88
    %28 = vst [vmem:[%s27] sm:%s3] %v26
    %s29 = smul.addr 4, 10
    %s30 = scalar_lea.vmem %s0, %s29
    %v31 = vld [vmem:[%s30] sm:%s3]
    %s32 = scalar_lea.vmem [#allocation0], 80
    %33 = vst [vmem:[%s32] sm:%s3] %v31
    %s34 = smul.addr 4, 9
    %s35 = scalar_lea.vmem %s0, %s34
    %v36 = vld [vmem:[%s35] sm:%s3]
    %s37 = scalar_lea.vmem [#allocation0], 72
    %38 = vst [vmem:[%s37] sm:%s3] %v36
    %s39 = smul.addr 4, 8
    %s40 = scalar_lea.vmem %s0, %s39
    %v41 = vld [vmem:[%s40] sm:%s3]
    %s42 = scalar_lea.vmem [#allocation0], 64
    %43 = vst [vmem:[%s42] sm:%s3] %v41
    %s44 = smul.addr 4, 7
    %s45 = scalar_lea.vmem %s0, %s44
    %v46 = vld [vmem:[%s45] sm:%s3]
    %s47 = scalar_lea.vmem [#allocation0], 56
    %48 = vst [vmem:[%s47] sm:%s3] %v46
    %s49 = smul.addr 4, 6
    %s50 = scalar_lea.vmem %s0, %s49
    %v51 = vld [vmem:[%s50] sm:%s3]
    %s52 = scalar_lea.vmem [#allocation0], 48
    %53 = vst [vmem:[%s52] sm:%s3] %v51
    %s54 = smul.addr 4, 5
    %s55 = scalar_lea.vmem %s0, %s54
    %v56 = vld [vmem:[%s55] sm:%s3]
    %s57 = scalar_lea.vmem [#allocation0], 40
    %58 = vst [vmem:[%s57] sm:%s3] %v56
    %s59 = smul.addr 4, 4
    %s60 = scalar_lea.vmem %s0, %s59
    %v61 = vld [vmem:[%s60] sm:%s3]
    %s62 = scalar_lea.vmem [#allocation0], 32
    %63 = vst [vmem:[%s62] sm:%s3] %v61
    %s64 = smul.addr 4, 3
    %s65 = scalar_lea.vmem %s0, %s64
    %v66 = vld [vmem:[%s65] sm:%s3]
    %s67 = scalar_lea.vmem [#allocation0], 24
    %68 = vst [vmem:[%s67] sm:%s3] %v66
    %s69 = smul.addr 4, 2
    %s70 = scalar_lea.vmem %s0, %s69
    %v71 = vld [vmem:[%s70] sm:%s3]
    %s72 = scalar_lea.vmem [#allocation0], 16
    %73 = vst [vmem:[%s72] sm:%s3] %v71
    %s74 = scalar_lea.vmem %s0, 4
    %v75 = vld [vmem:[%s74] sm:%s3]
    %s76 = scalar_lea.vmem [#allocation0], 8
    %77 = vst [vmem:[%s76] sm:%s3] %v75
    %v78 = vld [vmem:[%s0] sm:%s3]
    %79 = vst [vmem:[#allocation0] sm:%s3] %v78
    %v80 = vld [vmem:[#allocation0] ss:$8 sm:$0xf]
    %v81 = vld [vmem:[#allocation0] ss:$8 sm:$0xf0]
    %vm82 = vcmask 1047556
    %v83 = vsel %vm82, %v81, %v80
    %vm84 = vcmask 130048
    %85 = vst.msk [vmem:[%s1] sm:$0xff] %vm84, %v83
    %s86 = scalar_lea.vmem [#allocation0], 64
    %v87 = vld [vmem:[%s86] ss:$8 sm:$0xf]
    %s88 = scalar_lea.vmem [#allocation0], 64
    %v89 = vld [vmem:[%s88] ss:$8 sm:$0xf0]
    %vm90 = vcmask 1047556
    %v91 = vsel %vm90, %v89, %v87
    %vm92 = vcmask 130048
    %s93 = scalar_lea.vmem %s1, 8
    %94 = vst.msk [vmem:[%s93] sm:$0xff] %vm92, %v91
    %s95 = scalar_lea.vmem [#allocation0], 3
    %v96 = vld [vmem:[%s95] ss:$8 sm:$0xf]
    %s97 = scalar_lea.vmem [#allocation0], 3
    %v98 = vld [vmem:[%s97] ss:$8 sm:$0xf0]
    %vm99 = vcmask 1047556
    %v100 = vsel %vm99, %v98, %v96
    %101 = vrot.lane.b32.xlu0 %v100, 48
    %v102 = vpop.permute.xlu0 %101
    %vm103 = vcmask 523648
    %104 = vst.msk [vmem:[%s1] sm:$0xff] %vm103, %v102
    %s105 = scalar_lea.vmem [#allocation0], 67
    %v106 = vld [vmem:[%s105] ss:$8 sm:$0xf]
    %s107 = scalar_lea.vmem [#allocation0], 67
    %v108 = vld [vmem:[%s107] ss:$8 sm:$0xf0]
    %vm109 = vcmask 1047556
    %v110 = vsel %vm109, %v108, %v106
    %111 = vrot.lane.b32.xlu0 %v110, 48
    %v112 = vpop.permute.xlu0 %111
    %vm113 = vcmask 523648
    %s114 = scalar_lea.vmem %s1, 8
    %115 = vst.msk [vmem:[%s114] sm:$0xff] %vm113, %v112
    %s116 = scalar_lea.vmem [#allocation0], 2
    %v117 = vld [vmem:[%s116] ss:$8 sm:$0xf]
    %s118 = scalar_lea.vmem [#allocation0], 2
    %v119 = vld [vmem:[%s118] ss:$8 sm:$0xf0]
    %vm120 = vcmask 1047556
    %v121 = vsel %vm120, %v119, %v117
    %122 = vrot.lane.b32.xlu0 %v121, 32
    %v123 = vpop.permute.xlu0 %122
    %vm124 = vcmask 392448
    %125 = vst.msk [vmem:[%s1] sm:$0xff] %vm124, %v123
    %s126 = scalar_lea.vmem [#allocation0], 66
    %v127 = vld [vmem:[%s126] ss:$8 sm:$0xf]
    %s128 = scalar_lea.vmem [#allocation0], 66
    %v129 = vld [vmem:[%s128] ss:$8 sm:$0xf0]
    %vm130 = vcmask 1047556
    %v131 = vsel %vm130, %v129, %v127
    %132 = vrot.lane.b32.xlu0 %v131, 32
    %v133 = vpop.permute.xlu0 %132
    %vm134 = vcmask 392448
    %s135 = scalar_lea.vmem %s1, 8
    %136 = vst.msk [vmem:[%s135] sm:$0xff] %vm134, %v133
    %s137 = scalar_lea.vmem [#allocation0], 1
    %v138 = vld [vmem:[%s137] ss:$8 sm:$0xf]
    %s139 = scalar_lea.vmem [#allocation0], 1
    %v140 = vld [vmem:[%s139] ss:$8 sm:$0xf0]
    %vm141 = vcmask 1047556
    %v142 = vsel %vm141, %v140, %v138
    %143 = vrot.lane.b32.xlu0 %v142, 16
    %v144 = vpop.permute.xlu0 %143
    %vm145 = vcmask 261248
    %146 = vst.msk [vmem:[%s1] sm:$0xff] %vm145, %v144
    %s147 = scalar_lea.vmem [#allocation0], 65
    %v148 = vld [vmem:[%s147] ss:$8 sm:$0xf]
    %s149 = scalar_lea.vmem [#allocation0], 65
    %v150 = vld [vmem:[%s149] ss:$8 sm:$0xf0]
    %vm151 = vcmask 1047556
    %v152 = vsel %vm151, %v150, %v148
    %153 = vrot.lane.b32.xlu0 %v152, 16
    %v154 = vpop.permute.xlu0 %153
    %vm155 = vcmask 261248
    %s156 = scalar_lea.vmem %s1, 8
    %157 = vst.msk [vmem:[%s156] sm:$0xff] %vm155, %v154

// kernel: forward.1
$region0: #{forward.1}
  #allocation0 [shape = 'u32[]', space=smem, size = 0x4, offset = 0x4, fixed_abs, tag = 'smem constant byte address 0x4 - core index']
  #allocation1 [shape = 'u32[144,128]{1,0:T(1,128)}', space=vmem, size = 0x12000, scoped, tag = 'internal scratch']
  %s0 = inlined_call_operand.vmem [shape: f32[16,1], index: 0, kind: input, shape index: {}]
  %s1 = inlined_call_operand.vmem [shape: f32[16,32], index: 1, kind: input, shape index: {}]
  %s2 = inlined_call_operand.vmem [shape: f32[16,64], index: 2, kind: input, shape index: {}]
  %s3 = inlined_call_operand.vmem [shape: f32[64,64], index: 3, kind: input, shape index: {}]
  %s4 = inlined_call_operand.vmem [shape: f32[2,32], index: 4, kind: input, shape index: {}]
  %s5 = inlined_call_operand.vmem [shape: f32[6,32,32], index: 5, kind: input, shape index: {}]
  %s6 = inlined_call_operand.vmem [shape: f32[2,32,32], index: 6, kind: input, shape index: {}]
  %s7 = inlined_call_operand.vmem [shape: f32[2,32,128], index: 7, kind: input, shape index: {}]
  %s8 = inlined_call_operand.vmem [shape: f32[2,128,32], index: 8, kind: input, shape index: {}]
  %s9 = inlined_call_operand.vmem [shape: f32[2,10,128], index: 9, kind: input, shape index: {}]
  %s10 = inlined_call_operand.vmem [shape: f32[32,5], index: 10, kind: input, shape index: {}]
  %s11 = inlined_call_operand.vmem [shape: f32[1,5], index: 11, kind: input, shape index: {}]
  %s12 = inlined_call_operand.vmem [shape: f32[2,5], index: 12, kind: output, shape index: {}]
  %s13 = sld [smem:[#allocation0]]
  $region58: #{forward.1} parent=0
    _
  %s15 = ssub.s32 1, %s13
  %s16 = scalar_select 0, %s15, %s13
  // Predicated region
  $region2: #{forward.1} parent=0 // pred_check
    _
  $region3: #{forward.1} parent=0 // pred_check_branch
    %18 = sbr.rel (0) target = $region5
  $region4: #{forward.1} parent=0 // pred_region
    _
  $region5: #{forward.1} parent=0 // pred_fallthru
    _
  // Predicated region
  $region6: #{forward.1} parent=0 // pred_check
    _
  $region7: #{forward.1} parent=0 // pred_check_branch
    %20 = sbr.rel (0) target = $region9
  $region8: #{forward.1} parent=0 // pred_region
    _
  $region9: #{forward.1} parent=0 // pred_fallthru
    _
  // Predicated region
  $region10: #{forward.1} parent=0 // pred_check
    _
  $region11: #{forward.1} parent=0 // pred_check_branch
    %22 = sbr.rel (0) target = $region13
  $region12: #{forward.1} parent=0 // pred_region
    _
  $region13: #{forward.1} parent=0 // pred_fallthru
    _
  // Predicated region
  $region14: #{forward.1} parent=0 // pred_check
    _
  $region15: #{forward.1} parent=0 // pred_check_branch
    %24 = sbr.rel (0) target = $region17
  $region16: #{forward.1} parent=0 // pred_region
    _
  $region17: #{forward.1} parent=0 // pred_fallthru
    _
  // Predicated region
  $region18: #{forward.1} parent=0 // pred_check
    _
  $region19: #{forward.1} parent=0 // pred_check_branch
    %26 = sbr.rel (0) target = $region21
  $region20: #{forward.1} parent=0 // pred_region
    _
  $region21: #{forward.1} parent=0 // pred_fallthru
    _
  // Predicated region
  $region22: #{forward.1} parent=0 // pred_check
    _
  $region23: #{forward.1} parent=0 // pred_check_branch
    %28 = sbr.rel (0) target = $region25
  $region24: #{forward.1} parent=0 // pred_region
    _
  $region25: #{forward.1} parent=0 // pred_fallthru
    _
  // Predicated region
  $region26: #{forward.1} parent=0 // pred_check
    _
  $region27: #{forward.1} parent=0 // pred_check_branch
    %30 = sbr.rel (0) target = $region29
  $region28: #{forward.1} parent=0 // pred_region
    _
  $region29: #{forward.1} parent=0 // pred_fallthru
    _
  // Predicated region
  $region30: #{forward.1} parent=0 // pred_check
    _
  $region31: #{forward.1} parent=0 // pred_check_branch
    %32 = sbr.rel (0) target = $region33
  $region32: #{forward.1} parent=0 // pred_region
    _
  $region33: #{forward.1} parent=0 // pred_fallthru
    _
  // Predicated region
  $region34: #{forward.1} parent=0 // pred_check
    _
  $region35: #{forward.1} parent=0 // pred_check_branch
    %34 = sbr.rel (0) target = $region37
  $region36: #{forward.1} parent=0 // pred_region
    _
  $region37: #{forward.1} parent=0 // pred_fallthru
    _
  // Predicated region
  $region38: #{forward.1} parent=0 // pred_check
    _
  $region39: #{forward.1} parent=0 // pred_check_branch
    %36 = sbr.rel (0) target = $region41
  $region40: #{forward.1} parent=0 // pred_region
    _
  $region41: #{forward.1} parent=0 // pred_fallthru
    _
  // Predicated region
  $region42: #{forward.1} parent=0 // pred_check
    _
  $region43: #{forward.1} parent=0 // pred_check_branch
    %38 = sbr.rel (0) target = $region45
  $region44: #{forward.1} parent=0 // pred_region
    _
  $region45: #{forward.1} parent=0 // pred_fallthru
    _
  // Predicated region
  $region46: #{forward.1} parent=0 // pred_check
    _
  $region47: #{forward.1} parent=0 // pred_check_branch
    %40 = sbr.rel (0) target = $region49
  $region48: #{forward.1} parent=0 // pred_region
    _
  $region49: #{forward.1} parent=0 // pred_fallthru
    _
  %v41 = vld [vmem:[%s4] sm:$0x3]
  %v42 = vld [vmem:[%s0] sm:$0xff]
  %v43 = vld [vmem:[%s0 + $0x8] sm:$0xff]
  %45 = vset.pattern.permute.xlu0 0
  %46 = vperm.xlu0 %45, %v42
  %v47 = vpop.permute.xlu0 %46
  %50 = vset.pattern.permute.xlu0 0
  %51 = vperm.xlu0 %50, %v43
  %v52 = vpop.permute.xlu0 %51
  %v54 = vlaneseq
  %v55 = vshrl.u32 %v54, 7
  %v56 = vsub.s32 0, %v55
  %v57 = vrot.slane %v41, %v56
  %v58 = vmul.f32 %v47, %v57
  %v59 = vmul.f32 %v52, %v57
  %v60 = vlaneseq
  %v61 = vshrl.u32 %v60, 7
  %v62 = vsub.s32 1, %v61
  %v63 = vrot.slane %v41, %v62
  %v64 = vadd.f32 %v58, %v63
  %v65 = vadd.f32 %v59, %v63
  %v66 = vld [vmem:[%s1] sm:$0xff]
  %v67 = vld [vmem:[%s1 + $0x8] sm:$0xff]
  %v68 = vadd.f32 %v64, %v66
  %v69 = vadd.f32 %v65, %v67
  %v70 = vld [vmem:[%s2] sm:$0xff]
  %v71 = vld [vmem:[%s2 + $0x8] sm:$0xff]
  %v72 = vld [vmem:[%s3] sm:$0xff]
  %v73 = vld [vmem:[%s3 + $0x8] sm:$0xff]
  %v74 = vld [vmem:[%s3 + $0x10] sm:$0xff]
  %v75 = vld [vmem:[%s3 + $0x18] sm:$0xff]
  %v76 = vld [vmem:[%s3 + $0x20] sm:$0xff]
  %v77 = vld [vmem:[%s3 + $0x28] sm:$0xff]
  %v78 = vld [vmem:[%s3 + $0x30] sm:$0xff]
  %v79 = vld [vmem:[%s3 + $0x38] sm:$0xff]
  %v80 = vlaneseq
  %v81 = vand.u32 %v80, 127
  %v82 = vld [vmem:[%s9] sm:$0xff]
  %v83 = vld [vmem:[%s9 + $0x8] sm:$0x3]
  %v84 = vld [vmem:[%s5] sm:$0xff]
  %v85 = vld [vmem:[%s5 + $0x8] sm:$0xff]
  %v86 = vld [vmem:[%s5 + $0x10] sm:$0xff]
  %v87 = vld [vmem:[%s5 + $0x18] sm:$0xff]
  %v88 = vlaneseq
  %v89 = vshrl.u32 %v88, 7
  %v90 = vsub.s32 0, %v89
  %v91 = vrot.slane %v82, %v90
  %vm92 = vcmask 261120
  %v94 = vsel %vm92, %v68, 0
  %v97 = vsel %vm92, %v69, 0
  %99 = vmatprep.subr.mxu0 0.0
  %100 = vmatpush1.msra.mxu0 %v84
  %101 = vmatprep.subr.mxu0 0.0
  %102 = vmatpush1.msra.mxu0 %v85
  %103 = vmatprep.subr.mxu0 0.0
  %104 = vmatpush1.msra.mxu0 %v86
  %105 = vmatprep.subr.mxu0 0.0
  %106 = vmatpush1.msra.mxu0 %v87
  %107 = vmatprep.subr.mxu0 0.0
  %108 = vmatpush1.msra.mxu0 0.0
  %109 = vmatprep.subr.mxu0 0.0
  %110 = vmatpush1.msra.mxu0 0.0
  %111 = vmatprep.subr.mxu0 0.0
  %112 = vmatpush1.msra.mxu0 0.0
  %113 = vmatprep.subr.mxu0 0.0
  %114 = vmatpush1.msra.mxu0 0.0
  %115 = vmatprep.subr.mxu0 0.0
  %116 = vmatpush1.msra.mxu0 0.0
  %117 = vmatprep.subr.mxu0 0.0
  %118 = vmatpush1.msra.mxu0 0.0
  %119 = vmatprep.subr.mxu0 0.0
  %120 = vmatpush1.msra.mxu0 0.0
  %121 = vmatprep.subr.mxu0 0.0
  %122 = vmatpush1.msra.mxu0 0.0
  %123 = vmatprep.subr.mxu0 0.0
  %124 = vmatpush1.msra.mxu0 0.0
  %125 = vmatprep.subr.mxu0 0.0
  %126 = vmatpush1.msra.mxu0 0.0
  %127 = vmatprep.subr.mxu0 0.0
  %128 = vmatpush1.msra.mxu0 0.0
  %129 = vmatprep.subr.mxu0 0.0
  %130 = vmatpush1.msra.mxu0 0.0
  %131 = vmatprep.subr.mxu0 0.0
  %132 = vmatpush1.msra.mxu0 0.0
  %133 = vmatprep.subr.mxu0 0.0
  %134 = vmatpush1.msra.mxu0 0.0
  %135 = vmatprep.subr.mxu0 0.0
  %136 = vmatpush1.msra.mxu0 0.0
  %137 = vmatprep.subr.mxu0 0.0
  %138 = vmatpush1.msra.mxu0 0.0
  %139 = vmatprep.subr.mxu0 0.0
  %140 = vmatpush1.msra.mxu0 0.0
  %141 = vmatprep.subr.mxu0 0.0
  %142 = vmatpush1.msra.mxu0 0.0
  %143 = vmatprep.subr.mxu0 0.0
  %144 = vmatpush1.msra.mxu0 0.0
  %145 = vmatprep.subr.mxu0 0.0
  %146 = vmatpush1.msra.mxu0 0.0
  %147 = vmatprep.subr.mxu0 0.0
  %148 = vmatpush1.msra.mxu0 0.0
  %149 = vmatprep.subr.mxu0 0.0
  %150 = vmatpush1.msra.mxu0 0.0
  %151 = vmatprep.subr.mxu0 0.0
  %152 = vmatpush1.msra.mxu0 0.0
  %153 = vmatprep.subr.mxu0 0.0
  %154 = vmatpush1.msra.mxu0 0.0
  %155 = vmatprep.subr.mxu0 0.0
  %156 = vmatpush1.msra.mxu0 0.0
  %157 = vmatprep.subr.mxu0 0.0
  %158 = vmatpush1.msra.mxu0 0.0
  %159 = vmatprep.subr.mxu0 0.0
  %160 = vmatpush1.msra.mxu0 0.0
  %161 = vmatprep.subr.mxu0 0.0
  %162 = vmatpush1.msra.mxu0 0.0
  %163 = vmatprep.mubr.f32.mxu0 0.0
  %164 = vmatmul.mubr.f32.gmra.mrb[0].mxu0 %v94
  %v165 = vpop.f32.mrb[0].mxu0
  %v166 = vadd.f32 %v91, %v165
  %v167 = vpop.f32.mrb[0].mxu0
  %168 = vmatprep.mubr.f32.mxu0 0.0
  %169 = vmatmul.mubr.f32.gmra.mrb[0].mxu0 %v97
  %v170 = vpop.f32.mrb[0].mxu0
  %v171 = vadd.f32 %v91, %v170
  %v172 = vpop.f32.mrb[0].mxu0
  %173 = vdwg.mxu0
  %s174 = scalar_lea.vmem %s5, 32
  %v175 = vld [vmem:[%s174] sm:$0xff]
  %v176 = vld [vmem:[%s174 + $0x8] sm:$0xff]
  %v177 = vld [vmem:[%s174 + $0x10] sm:$0xff]
  %v178 = vld [vmem:[%s174 + $0x18] sm:$0xff]
  %v179 = vlaneseq
  %v180 = vshrl.u32 %v179, 7
  %v181 = vsub.s32 1, %v180
  %v182 = vrot.slane %v82, %v181
  %183 = vmatprep.subr.mxu0 0.0
  %184 = vmatpush1.msra.mxu0 %v175
  %185 = vmatprep.subr.mxu0 0.0
  %186 = vmatpush1.msra.mxu0 %v176
  %187 = vmatprep.subr.mxu0 0.0
  %188 = vmatpush1.msra.mxu0 %v177
  %189 = vmatprep.subr.mxu0 0.0
  %190 = vmatpush1.msra.mxu0 %v178
  %191 = vmatprep.subr.mxu0 0.0
  %192 = vmatpush1.msra.mxu0 0.0
  %193 = vmatprep.subr.mxu0 0.0
  %194 = vmatpush1.msra.mxu0 0.0
  %195 = vmatprep.subr.mxu0 0.0
  %196 = vmatpush1.msra.mxu0 0.0
  %197 = vmatprep.subr.mxu0 0.0
  %198 = vmatpush1.msra.mxu0 0.0
  %199 = vmatprep.subr.mxu0 0.0
  %200 = vmatpush1.msra.mxu0 0.0
  %201 = vmatprep.subr.mxu0 0.0
  %202 = vmatpush1.msra.mxu0 0.0
  %203 = vmatprep.subr.mxu0 0.0
  %204 = vmatpush1.msra.mxu0 0.0
  %205 = vmatprep.subr.mxu0 0.0
  %206 = vmatpush1.msra.mxu0 0.0
  %207 = vmatprep.subr.mxu0 0.0
  %208 = vmatpush1.msra.mxu0 0.0
  %209 = vmatprep.subr.mxu0 0.0
  %210 = vmatpush1.msra.mxu0 0.0
  %211 = vmatprep.subr.mxu0 0.0
  %212 = vmatpush1.msra.mxu0 0.0
  %213 = vmatprep.subr.mxu0 0.0
  %214 = vmatpush1.msra.mxu0 0.0
  %215 = vmatprep.subr.mxu0 0.0
  %216 = vmatpush1.msra.mxu0 0.0
  %217 = vmatprep.subr.mxu0 0.0
  %218 = vmatpush1.msra.mxu0 0.0
  %219 = vmatprep.subr.mxu0 0.0
  %220 = vmatpush1.msra.mxu0 0.0
  %221 = vmatprep.subr.mxu0 0.0
  %222 = vmatpush1.msra.mxu0 0.0
  %223 = vmatprep.subr.mxu0 0.0
  %224 = vmatpush1.msra.mxu0 0.0
  %225 = vmatprep.subr.mxu0 0.0
  %226 = vmatpush1.msra.mxu0 0.0
  %227 = vmatprep.subr.mxu0 0.0
  %228 = vmatpush1.msra.mxu0 0.0
  %229 = vmatprep.subr.mxu0 0.0
  %230 = vmatpush1.msra.mxu0 0.0
  %231 = vmatprep.subr.mxu0 0.0
  %232 = vmatpush1.msra.mxu0 0.0
  %233 = vmatprep.subr.mxu0 0.0
  %234 = vmatpush1.msra.mxu0 0.0
  %235 = vmatprep.subr.mxu0 0.0
  %236 = vmatpush1.msra.mxu0 0.0
  %237 = vmatprep.subr.mxu0 0.0
  %238 = vmatpush1.msra.mxu0 0.0
  %239 = vmatprep.subr.mxu0 0.0
  %240 = vmatpush1.msra.mxu0 0.0
  %241 = vmatprep.subr.mxu0 0.0
  %242 = vmatpush1.msra.mxu0 0.0
  %243 = vmatprep.subr.mxu0 0.0
  %244 = vmatpush1.msra.mxu0 0.0
  %245 = vmatprep.subr.mxu0 0.0
  %246 = vmatpush1.msra.mxu0 0.0
  %247 = vmatprep.mubr.f32.mxu0 0.0
  %248 = vmatmul.mubr.f32.gmra.mrb[0].mxu0 %v94
  %v249 = vpop.f32.mrb[0].mxu0
  %v250 = vadd.f32 %v182, %v249
  %v251 = vpop.f32.mrb[0].mxu0
  %252 = vmatprep.mubr.f32.mxu0 0.0
  %253 = vmatmul.mubr.f32.gmra.mrb[0].mxu0 %v97
  %v254 = vpop.f32.mrb[0].mxu0
  %v255 = vadd.f32 %v182, %v254
  %v256 = vpop.f32.mrb[0].mxu0
  %257 = vdwg.mxu0
  %s258 = scalar_lea.vmem %s5, 64
  %v259 = vld [vmem:[%s258] sm:$0xff]
  %v260 = vld [vmem:[%s258 + $0x8] sm:$0xff]
  %v261 = vld [vmem:[%s258 + $0x10] sm:$0xff]
  %v262 = vld [vmem:[%s258 + $0x18] sm:$0xff]
  %v263 = vlaneseq
  %v264 = vshrl.u32 %v263, 7
  %v265 = vsub.s32 2, %v264
  %v266 = vrot.slane %v82, %v265
  %267 = vmatprep.subr.mxu0 0.0
  %268 = vmatpush1.msra.mxu0 %v259
  %269 = vmatprep.subr.mxu0 0.0
  %270 = vmatpush1.msra.mxu0 %v260
  %271 = vmatprep.subr.mxu0 0.0
  %272 = vmatpush1.msra.mxu0 %v261
  %273 = vmatprep.subr.mxu0 0.0
  %274 = vmatpush1.msra.mxu0 %v262
  %275 = vmatprep.subr.mxu0 0.0
  %276 = vmatpush1.msra.mxu0 0.0
  %277 = vmatprep.subr.mxu0 0.0
  %278 = vmatpush1.msra.mxu0 0.0
  %279 = vmatprep.subr.mxu0 0.0
  %280 = vmatpush1.msra.mxu0 0.0
  %281 = vmatprep.subr.mxu0 0.0
  %282 = vmatpush1.msra.mxu0 0.0
  %283 = vmatprep.subr.mxu0 0.0
  %284 = vmatpush1.msra.mxu0 0.0
  %285 = vmatprep.subr.mxu0 0.0
  %286 = vmatpush1.msra.mxu0 0.0
  %287 = vmatprep.subr.mxu0 0.0
  %288 = vmatpush1.msra.mxu0 0.0
  %289 = vmatprep.subr.mxu0 0.0
  %290 = vmatpush1.msra.mxu0 0.0
  %291 = vmatprep.subr.mxu0 0.0
  %292 = vmatpush1.msra.mxu0 0.0
  %293 = vmatprep.subr.mxu0 0.0
  %294 = vmatpush1.msra.mxu0 0.0
  %295 = vmatprep.subr.mxu0 0.0
  %296 = vmatpush1.msra.mxu0 0.0
  %297 = vmatprep.subr.mxu0 0.0
  %298 = vmatpush1.msra.mxu0 0.0
  %299 = vmatprep.subr.mxu0 0.0
  %300 = vmatpush1.msra.mxu0 0.0
  %301 = vmatprep.subr.mxu0 0.0
  %302 = vmatpush1.msra.mxu0 0.0
  %303 = vmatprep.subr.mxu0 0.0
  %304 = vmatpush1.msra.mxu0 0.0
  %305 = vmatprep.subr.mxu0 0.0
  %306 = vmatpush1.msra.mxu0 0.0
  %307 = vmatprep.subr.mxu0 0.0
  %308 = vmatpush1.msra.mxu0 0.0
  %309 = vmatprep.subr.mxu0 0.0
  %310 = vmatpush1.msra.mxu0 0.0
  %311 = vmatprep.subr.mxu0 0.0
  %312 = vmatpush1.msra.mxu0 0.0
  %313 = vmatprep.subr.mxu0 0.0
  %314 = vmatpush1.msra.mxu0 0.0
  %315 = vmatprep.subr.mxu0 0.0
  %316 = vmatpush1.msra.mxu0 0.0
  %317 = vmatprep.subr.mxu0 0.0
  %318 = vmatpush1.msra.mxu0 0.0
  %319 = vmatprep.subr.mxu0 0.0
  %320 = vmatpush1.msra.mxu0 0.0
  %321 = vmatprep.subr.mxu0 0.0
  %322 = vmatpush1.msra.mxu0 0.0
  %323 = vmatprep.subr.mxu0 0.0
  %324 = vmatpush1.msra.mxu0 0.0
  %325 = vmatprep.subr.mxu0 0.0
  %326 = vmatpush1.msra.mxu0 0.0
  %327 = vmatprep.subr.mxu0 0.0
  %328 = vmatpush1.msra.mxu0 0.0
  %329 = vmatprep.subr.mxu0 0.0
  %330 = vmatpush1.msra.mxu0 0.0
  %331 = vmatprep.mubr.f32.mxu0 0.0
  %332 = vmatmul.mubr.f32.gmra.mrb[0].mxu0 %v94
  %v333 = vpop.f32.mrb[0].mxu0
  %v334 = vadd.f32 %v266, %v333
  %v335 = vpop.f32.mrb[0].mxu0
  %336 = vmatprep.mubr.f32.mxu0 0.0
  %337 = vmatmul.mubr.f32.gmra.mrb[0].mxu0 %v97
  %v338 = vpop.f32.mrb[0].mxu0
  %v339 = vadd.f32 %v266, %v338
  %v340 = vpop.f32.mrb[0].mxu0
  %341 = vdwg.mxu0
  %vm342 = vcmp.ge.s32.totalorder %v81, 0
  %vm343 = vcmp.lt.s32.totalorder %v81, 8
  %vm344 = vmand %vm342, %vm343
  %v345 = vsel %vm344, %v250, 0.0
  %v346 = vsel %vm344, %v255, 0.0
  %v347 = vsel %vm344, %v334, 0.0
  %v348 = vsel %vm344, %v339, 0.0
  %vm349 = vcmp.ge.s32.totalorder %v81, 8
  %vm350 = vcmp.lt.s32.totalorder %v81, 16
  %vm351 = vmand %vm349, %vm350
  %v352 = vsel %vm351, %v250, 0.0
  %v353 = vsel %vm351, %v255, 0.0
  %v354 = vsel %vm351, %v334, 0.0
  %v355 = vsel %vm351, %v339, 0.0
  %vm356 = vcmp.ge.s32.totalorder %v81, 16
  %vm357 = vcmp.lt.s32.totalorder %v81, 24
  %vm358 = vmand %vm356, %vm357
  %v359 = vsel %vm358, %v250, 0.0
  %v360 = vsel %vm358, %v255, 0.0
  %v361 = vsel %vm358, %v334, 0.0
  %v362 = vsel %vm358, %v339, 0.0
  %vm363 = vcmp.ge.s32.totalorder %v81, 24
  %vm364 = vcmp.lt.s32.totalorder %v81, 32
  %vm365 = vmand %vm363, %vm364
  %v366 = vsel %vm365, %v250, 0.0
  %v367 = vsel %vm365, %v255, 0.0
  %v368 = vsel %vm365, %v334, 0.0
  %v369 = vsel %vm365, %v339, 0.0
  %v371 = vsel %vm92, %v166, 0
  %v374 = vsel %vm92, %v171, 0
  %v377 = vsel %vm92, %v345, 0
  %v380 = vsel %vm92, %v346, 0
  %v383 = vsel %vm92, %v352, 0
  %v386 = vsel %vm92, %v353, 0
  %v389 = vsel %vm92, %v359, 0
  %v392 = vsel %vm92, %v360, 0
  %v395 = vsel %vm92, %v366, 0
  %v398 = vsel %vm92, %v367, 0
  %400 = vmatprep.subr.mxu0 0.0
  %401 = vmatpush1.xpose.msra.mxu0 %v377
  %402 = vmatprep.subr.mxu0 0.0
  %403 = vmatpush1.xpose.msra.mxu0 %v380
  %404 = vmatprep.subr.mxu0 0.0
  %405 = vmatpush1.xpose.msra.mxu0 %v383
  %406 = vmatprep.subr.mxu0 0.0
  %407 = vmatpush1.xpose.msra.mxu0 %v386
  %408 = vmatprep.subr.mxu0 0.0
  %409 = vmatpush1.xpose.msra.mxu0 %v389
  %410 = vmatprep.subr.mxu0 0.0
  %411 = vmatpush1.xpose.msra.mxu0 %v392
  %412 = vmatprep.subr.mxu0 0.0
  %413 = vmatpush1.xpose.msra.mxu0 %v395
  %414 = vmatprep.subr.mxu0 0.0
  %415 = vmatpush1.xpose.msra.mxu0 %v398
  %416 = vmatprep.subr.mxu0 0.0
  %417 = vmatpush1.xpose.msra.mxu0 0.0
  %418 = vmatprep.subr.mxu0 0.0
  %419 = vmatpush1.xpose.msra.mxu0 0.0
  %420 = vmatprep.subr.mxu0 0.0
  %421 = vmatpush1.xpose.msra.mxu0 0.0
  %422 = vmatprep.subr.mxu0 0.0
  %423 = vmatpush1.xpose.msra.mxu0 0.0
  %424 = vmatprep.subr.mxu0 0.0
  %425 = vmatpush1.xpose.msra.mxu0 0.0
  %426 = vmatprep.subr.mxu0 0.0
  %427 = vmatpush1.xpose.msra.mxu0 0.0
  %428 = vmatprep.subr.mxu0 0.0
  %429 = vmatpush1.xpose.msra.mxu0 0.0
  %430 = vmatprep.subr.mxu0 0.0
  %431 = vmatpush1.xpose.msra.mxu0 0.0
  %432 = vmatprep.subr.mxu0 0.0
  %433 = vmatpush1.xpose.msra.mxu0 0.0
  %434 = vmatprep.subr.mxu0 0.0
  %435 = vmatpush1.xpose.msra.mxu0 0.0
  %436 = vmatprep.subr.mxu0 0.0
  %437 = vmatpush1.xpose.msra.mxu0 0.0
  %438 = vmatprep.subr.mxu0 0.0
  %439 = vmatpush1.xpose.msra.mxu0 0.0
  %440 = vmatprep.subr.mxu0 0.0
  %441 = vmatpush1.xpose.msra.mxu0 0.0
  %442 = vmatprep.subr.mxu0 0.0
  %443 = vmatpush1.xpose.msra.mxu0 0.0
  %444 = vmatprep.subr.mxu0 0.0
  %445 = vmatpush1.xpose.msra.mxu0 0.0
  %446 = vmatprep.subr.mxu0 0.0
  %447 = vmatpush1.xpose.msra.mxu0 0.0
  %448 = vmatprep.subr.mxu0 0.0
  %449 = vmatpush1.xpose.msra.mxu0 0.0
  %450 = vmatprep.subr.mxu0 0.0
  %451 = vmatpush1.xpose.msra.mxu0 0.0
  %452 = vmatprep.subr.mxu0 0.0
  %453 = vmatpush1.xpose.msra.mxu0 0.0
  %454 = vmatprep.subr.mxu0 0.0
  %455 = vmatpush1.xpose.msra.mxu0 0.0
  %456 = vmatprep.subr.mxu0 0.0
  %457 = vmatpush1.xpose.msra.mxu0 0.0
  %458 = vmatprep.subr.mxu0 0.0
  %459 = vmatpush1.xpose.msra.mxu0 0.0
  %460 = vmatprep.subr.mxu0 0.0
  %461 = vmatpush1.xpose.msra.mxu0 0.0
  %462 = vmatprep.subr.mxu0 0.0
  %463 = vmatpush1.xpose.msra.mxu0 0.0
  %464 = vmatprep.mubr.f32.mxu0 0.0
  %465 = vmatmul.mubr.f32.gmra.mrb[0].mxu0 %v371
  %v466 = vpop.f32.mrb[0].mxu0
  %v467 = vadd.f32 %v70, %v466
  %v468 = vpop.f32.mrb[0].mxu0
  %469 = vmatprep.mubr.f32.mxu0 0.0
  %470 = vmatmul.mubr.f32.gmra.mrb[0].mxu0 %v374
  %v471 = vpop.f32.mrb[0].mxu0
  %v472 = vadd.f32 %v71, %v471
  %v473 = vpop.f32.mrb[0].mxu0
  %474 = vdwg.mxu0
  %vm475 = vcmask 523264
  %v476 = vsel %vm475, %v467, -inf
  %477 = vmax.xlane.f32.xlu0 %v476
  %v478 = vpop.xlane.xlu0 %477
  %v479 = vsel %vm475, %v472, -inf
  %480 = vmax.xlane.f32.xlu0 %v479
  %v481 = vpop.xlane.xlu0 %480
  %v482 = vsub.f32 %v467, %v478
  %v483 = vsub.f32 %v472, %v481
  %v484 = vmul.f32 %v482, 1.442695
  %v485 = vpow.pop %v484
  %v486 = vmul.f32 %v483, 1.442695
  %v487 = vpow.pop %v486
  %v489 = vsel %vm475, %v485, 0
  %v492 = vsel %vm475, %v487, 0
  %494 = vmatprep.subr.mxu0 0.0
  %495 = vmatpush1.msra.mxu0 %v72
  %496 = vmatprep.subr.mxu0 0.0
  %497 = vmatpush1.msra.mxu0 %v73
  %498 = vmatprep.subr.mxu0 0.0
  %499 = vmatpush1.msra.mxu0 %v74
  %500 = vmatprep.subr.mxu0 0.0
  %501 = vmatpush1.msra.mxu0 %v75
  %502 = vmatprep.subr.mxu0 0.0
  %503 = vmatpush1.msra.mxu0 %v76
  %504 = vmatprep.subr.mxu0 0.0
  %505 = vmatpush1.msra.mxu0 %v77
  %506 = vmatprep.subr.mxu0 0.0
  %507 = vmatpush1.msra.mxu0 %v78
  %508 = vmatprep.subr.mxu0 0.0
  %509 = vmatpush1.msra.mxu0 %v79
  %510 = vmatprep.subr.mxu0 0.0
  %511 = vmatpush1.msra.mxu0 0.0
  %512 = vmatprep.subr.mxu0 0.0
  %513 = vmatpush1.msra.mxu0 0.0
  %514 = vmatprep.subr.mxu0 0.0
  %515 = vmatpush1.msra.mxu0 0.0
  %516 = vmatprep.subr.mxu0 0.0
  %517 = vmatpush1.msra.mxu0 0.0
  %518 = vmatprep.subr.mxu0 0.0
  %519 = vmatpush1.msra.mxu0 0.0
  %520 = vmatprep.subr.mxu0 0.0
  %521 = vmatpush1.msra.mxu0 0.0
  %522 = vmatprep.subr.mxu0 0.0
  %523 = vmatpush1.msra.mxu0 0.0
  %524 = vmatprep.subr.mxu0 0.0
  %525 = vmatpush1.msra.mxu0 0.0
  %526 = vmatprep.subr.mxu0 0.0
  %527 = vmatpush1.msra.mxu0 0.0
  %528 = vmatprep.subr.mxu0 0.0
  %529 = vmatpush1.msra.mxu0 0.0
  %530 = vmatprep.subr.mxu0 0.0
  %531 = vmatpush1.msra.mxu0 0.0
  %532 = vmatprep.subr.mxu0 0.0
  %533 = vmatpush1.msra.mxu0 0.0
  %534 = vmatprep.subr.mxu0 0.0
  %535 = vmatpush1.msra.mxu0 0.0
  %536 = vmatprep.subr.mxu0 0.0
  %537 = vmatpush1.msra.mxu0 0.0
  %538 = vmatprep.subr.mxu0 0.0
  %539 = vmatpush1.msra.mxu0 0.0
  %540 = vmatprep.subr.mxu0 0.0
  %541 = vmatpush1.msra.mxu0 0.0
  %542 = vmatprep.subr.mxu0 0.0
  %543 = vmatpush1.msra.mxu0 0.0
  %544 = vmatprep.subr.mxu0 0.0
  %545 = vmatpush1.msra.mxu0 0.0
  %546 = vmatprep.subr.mxu0 0.0
  %547 = vmatpush1.msra.mxu0 0.0
  %548 = vmatprep.subr.mxu0 0.0
  %549 = vmatpush1.msra.mxu0 0.0
  %550 = vmatprep.subr.mxu0 0.0
  %551 = vmatpush1.msra.mxu0 0.0
  %552 = vmatprep.subr.mxu0 0.0
  %553 = vmatpush1.msra.mxu0 0.0
  %554 = vmatprep.subr.mxu0 0.0
  %555 = vmatpush1.msra.mxu0 0.0
  %556 = vmatprep.subr.mxu0 0.0
  %557 = vmatpush1.msra.mxu0 0.0
  %558 = vmatprep.mubr.f32.mxu0 0.0
  %559 = vmatmul.mubr.f32.gmra.mrb[0].mxu0 %v489
  %v560 = vpop.f32.mrb[0].mxu0
  %v561 = vadd.f32 0.0, %v560
  %v562 = vpop.f32.mrb[0].mxu0
  %563 = vmatprep.mubr.f32.mxu0 0.0
  %564 = vmatmul.mubr.f32.gmra.mrb[0].mxu0 %v492
  %v565 = vpop.f32.mrb[0].mxu0
  %v566 = vadd.f32 0.0, %v565
  %v567 = vpop.f32.mrb[0].mxu0
  %568 = vdwg.mxu0
  %v569 = vrcp.pop %v561
  %v570 = vmul.f32 %v485, %v569
  %v571 = vrcp.pop %v566
  %v572 = vmul.f32 %v487, %v571
  %v574 = vsel %vm475, %v570, 0
  %v577 = vsel %vm475, %v572, 0
  %579 = vmatprep.subr.mxu0 0.0
  %580 = vmatpush1.msra.mxu0 %v347
  %581 = vmatprep.subr.mxu0 0.0
  %582 = vmatpush1.msra.mxu0 %v348
  %583 = vmatprep.subr.mxu0 0.0
  %584 = vmatpush1.msra.mxu0 %v354
  %585 = vmatprep.subr.mxu0 0.0
  %586 = vmatpush1.msra.mxu0 %v355
  %587 = vmatprep.subr.mxu0 0.0
  %588 = vmatpush1.msra.mxu0 %v361
  %589 = vmatprep.subr.mxu0 0.0
  %590 = vmatpush1.msra.mxu0 %v362
  %591 = vmatprep.subr.mxu0 0.0
  %592 = vmatpush1.msra.mxu0 %v368
  %593 = vmatprep.subr.mxu0 0.0
  %594 = vmatpush1.msra.mxu0 %v369
  %595 = vmatprep.subr.mxu0 0.0
  %596 = vmatpush1.msra.mxu0 0.0
  %597 = vmatprep.subr.mxu0 0.0
  %598 = vmatpush1.msra.mxu0 0.0
  %599 = vmatprep.subr.mxu0 0.0
  %600 = vmatpush1.msra.mxu0 0.0
  %601 = vmatprep.subr.mxu0 0.0
  %602 = vmatpush1.msra.mxu0 0.0
  %603 = vmatprep.subr.mxu0 0.0
  %604 = vmatpush1.msra.mxu0 0.0
  %605 = vmatprep.subr.mxu0 0.0
  %606 = vmatpush1.msra.mxu0 0.0
  %607 = vmatprep.subr.mxu0 0.0
  %608 = vmatpush1.msra.mxu0 0.0
  %609 = vmatprep.subr.mxu0 0.0
  %610 = vmatpush1.msra.mxu0 0.0
  %611 = vmatprep.subr.mxu0 0.0
  %612 = vmatpush1.msra.mxu0 0.0
  %613 = vmatprep.subr.mxu0 0.0
  %614 = vmatpush1.msra.mxu0 0.0
  %615 = vmatprep.subr.mxu0 0.0
  %616 = vmatpush1.msra.mxu0 0.0
  %617 = vmatprep.subr.mxu0 0.0
  %618 = vmatpush1.msra.mxu0 0.0
  %619 = vmatprep.subr.mxu0 0.0
  %620 = vmatpush1.msra.mxu0 0.0
  %621 = vmatprep.subr.mxu0 0.0
  %622 = vmatpush1.msra.mxu0 0.0
  %623 = vmatprep.subr.mxu0 0.0
  %624 = vmatpush1.msra.mxu0 0.0
  %625 = vmatprep.subr.mxu0 0.0
  %626 = vmatpush1.msra.mxu0 0.0
  %627 = vmatprep.subr.mxu0 0.0
  %628 = vmatpush1.msra.mxu0 0.0
  %629 = vmatprep.subr.mxu0 0.0
  %630 = vmatpush1.msra.mxu0 0.0
  %631 = vmatprep.subr.mxu0 0.0
  %632 = vmatpush1.msra.mxu0 0.0
  %633 = vmatprep.subr.mxu0 0.0
  %634 = vmatpush1.msra.mxu0 0.0
  %635 = vmatprep.subr.mxu0 0.0
  %636 = vmatpush1.msra.mxu0 0.0
  %637 = vmatprep.subr.mxu0 0.0
  %638 = vmatpush1.msra.mxu0 0.0
  %639 = vmatprep.subr.mxu0 0.0
  %640 = vmatpush1.msra.mxu0 0.0
  %641 = vmatprep.subr.mxu0 0.0
  %642 = vmatpush1.msra.mxu0 0.0
  %643 = vmatprep.mubr.f32.mxu0 0.0
  %644 = vmatmul.mubr.f32.gmra.mrb[0].mxu0 %v574
  %v645 = vpop.f32.mrb[0].mxu0
  %v646 = vadd.f32 0.0, %v645
  %v647 = vpop.f32.mrb[0].mxu0
  %648 = vmatprep.mubr.f32.mxu0 0.0
  %649 = vmatmul.mubr.f32.gmra.mrb[0].mxu0 %v577
  %v650 = vpop.f32.mrb[0].mxu0
  %v651 = vadd.f32 0.0, %v650
  %v652 = vpop.f32.mrb[0].mxu0
  %653 = vdwg.mxu0
  %v654 = vld [vmem:[%s6] sm:$0xff]
  %v655 = vld [vmem:[%s6 + $0x8] sm:$0xff]
  %v656 = vld [vmem:[%s6 + $0x10] sm:$0xff]
  %v657 = vld [vmem:[%s6 + $0x18] sm:$0xff]
  %v658 = vlaneseq
  %v659 = vshrl.u32 %v658, 7
  %v660 = vsub.s32 3, %v659
  %v661 = vrot.slane %v82, %v660
  %v663 = vsel %vm92, %v646, 0
  %v666 = vsel %vm92, %v651, 0
  %668 = vmatprep.subr.mxu0 0.0
  %669 = vmatpush1.msra.mxu0 %v654
  %670 = vmatprep.subr.mxu0 0.0
  %671 = vmatpush1.msra.mxu0 %v655
  %672 = vmatprep.subr.mxu0 0.0
  %673 = vmatpush1.msra.mxu0 %v656
  %674 = vmatprep.subr.mxu0 0.0
  %675 = vmatpush1.msra.mxu0 %v657
  %676 = vmatprep.subr.mxu0 0.0
  %677 = vmatpush1.msra.mxu0 0.0
  %678 = vmatprep.subr.mxu0 0.0
  %679 = vmatpush1.msra.mxu0 0.0
  %680 = vmatprep.subr.mxu0 0.0
  %681 = vmatpush1.msra.mxu0 0.0
  %682 = vmatprep.subr.mxu0 0.0
  %683 = vmatpush1.msra.mxu0 0.0
  %684 = vmatprep.subr.mxu0 0.0
  %685 = vmatpush1.msra.mxu0 0.0
  %686 = vmatprep.subr.mxu0 0.0
  %687 = vmatpush1.msra.mxu0 0.0
  %688 = vmatprep.subr.mxu0 0.0
  %689 = vmatpush1.msra.mxu0 0.0
  %690 = vmatprep.subr.mxu0 0.0
  %691 = vmatpush1.msra.mxu0 0.0
  %692 = vmatprep.subr.mxu0 0.0
  %693 = vmatpush1.msra.mxu0 0.0
  %694 = vmatprep.subr.mxu0 0.0
  %695 = vmatpush1.msra.mxu0 0.0
  %696 = vmatprep.subr.mxu0 0.0
  %697 = vmatpush1.msra.mxu0 0.0
  %698 = vmatprep.subr.mxu0 0.0
  %699 = vmatpush1.msra.mxu0 0.0
  %700 = vmatprep.subr.mxu0 0.0
  %701 = vmatpush1.msra.mxu0 0.0
  %702 = vmatprep.subr.mxu0 0.0
  %703 = vmatpush1.msra.mxu0 0.0
  %704 = vmatprep.subr.mxu0 0.0
  %705 = vmatpush1.msra.mxu0 0.0
  %706 = vmatprep.subr.mxu0 0.0
  %707 = vmatpush1.msra.mxu0 0.0
  %708 = vmatprep.subr.mxu0 0.0
  %709 = vmatpush1.msra.mxu0 0.0
  %710 = vmatprep.subr.mxu0 0.0
  %711 = vmatpush1.msra.mxu0 0.0
  %712 = vmatprep.subr.mxu0 0.0
  %713 = vmatpush1.msra.mxu0 0.0
  %714 = vmatprep.subr.mxu0 0.0
  %715 = vmatpush1.msra.mxu0 0.0
  %716 = vmatprep.subr.mxu0 0.0
  %717 = vmatpush1.msra.mxu0 0.0
  %718 = vmatprep.subr.mxu0 0.0
  %719 = vmatpush1.msra.mxu0 0.0
  %720 = vmatprep.subr.mxu0 0.0
  %721 = vmatpush1.msra.mxu0 0.0
  %722 = vmatprep.subr.mxu0 0.0
  %723 = vmatpush1.msra.mxu0 0.0
  %724 = vmatprep.subr.mxu0 0.0
  %725 = vmatpush1.msra.mxu0 0.0
  %726 = vmatprep.subr.mxu0 0.0
  %727 = vmatpush1.msra.mxu0 0.0
  %728 = vmatprep.subr.mxu0 0.0
  %729 = vmatpush1.msra.mxu0 0.0
  %730 = vmatprep.subr.mxu0 0.0
  %731 = vmatpush1.msra.mxu0 0.0
  %732 = vmatprep.mubr.f32.mxu0 0.0
  %733 = vmatmul.mubr.f32.gmra.mrb[0].mxu0 %v663
  %v734 = vpop.f32.mrb[0].mxu0
  %v735 = vadd.f32 %v661, %v734
  %v736 = vpop.f32.mrb[0].mxu0
  %737 = vmatprep.mubr.f32.mxu0 0.0
  %738 = vmatmul.mubr.f32.gmra.mrb[0].mxu0 %v666
  %v739 = vpop.f32.mrb[0].mxu0
  %v740 = vadd.f32 %v661, %v739
  %v741 = vpop.f32.mrb[0].mxu0
  %742 = vdwg.mxu0
  %v743 = vadd.f32 %v68, %v735
  %v744 = vadd.f32 %v69, %v740
  %v745 = vsel %vm92, %v743, 0.0
  %746 = vadd.xlane.f32.xlu0 %v745
  %v747 = vpop.xlane.xlu0 %746
  %v748 = vsel %vm92, %v744, 0.0
  %749 = vadd.xlane.f32.xlu0 %v748
  %v750 = vpop.xlane.xlu0 %749
  %v751 = vrcp.pop 32.0
  %v752 = vmul.f32 %v747, %v751
  %v753 = vmul.f32 %v750, %v751
  %v754 = vsub.f32 %v743, %v752
  %v755 = vsub.f32 %v744, %v753
  %v756 = vmul.f32 %v754, %v754
  %v757 = vmul.f32 %v755, %v755
  %v758 = vsel %vm92, %v756, 0.0
  %759 = vadd.xlane.f32.xlu0 %v758
  %v760 = vpop.xlane.xlu0 %759
  %v761 = vsel %vm92, %v757, 0.0
  %762 = vadd.xlane.f32.xlu0 %v761
  %v763 = vpop.xlane.xlu0 %762
  %v764 = vmul.f32 %v760, %v751
  %v765 = vmul.f32 %v763, %v751
  %v766 = vadd.f32 %v764, 1e-05
  %v767 = vadd.f32 %v765, 1e-05
  %v768 = vrsqrt.pop %v766
  %v769 = vrsqrt.pop %v767
  %v770 = vmul.f32 %v754, %v768
  %v771 = vmul.f32 %v755, %v769
  %v772 = vlaneseq
  %v773 = vshrl.u32 %v772, 7
  %v774 = vsub.s32 4, %v773
  %v775 = vrot.slane %v82, %v774
  %v776 = vmul.f32 %v770, %v775
  %v777 = vmul.f32 %v771, %v775
  %v778 = vlaneseq
  %v779 = vshrl.u32 %v778, 7
  %v780 = vsub.s32 5, %v779
  %v781 = vrot.slane %v82, %v780
  %v782 = vadd.f32 %v776, %v781
  %v783 = vadd.f32 %v777, %v781
  %v784 = vld [vmem:[%s7] sm:$0xff]
  %v785 = vld [vmem:[%s7 + $0x8] sm:$0xff]
  %v786 = vld [vmem:[%s7 + $0x10] sm:$0xff]
  %v787 = vld [vmem:[%s7 + $0x18] sm:$0xff]
  %v788 = vlaneseq
  %v789 = vshrl.u32 %v788, 7
  %v790 = vsub.s32 6, %v789
  %v791 = vrot.slane %v82, %v790
  %v793 = vsel %vm92, %v782, 0
  %v796 = vsel %vm92, %v783, 0
  %798 = vmatprep.subr.mxu0 0.0
  %799 = vmatpush1.msra.mxu0 %v784
  %800 = vmatprep.subr.mxu0 0.0
  %801 = vmatpush1.msra.mxu0 %v785
  %802 = vmatprep.subr.mxu0 0.0
  %803 = vmatpush1.msra.mxu0 %v786
  %804 = vmatprep.subr.mxu0 0.0
  %805 = vmatpush1.msra.mxu0 %v787
  %806 = vmatprep.subr.mxu0 0.0
  %807 = vmatpush1.msra.mxu0 0.0
  %808 = vmatprep.subr.mxu0 0.0
  %809 = vmatpush1.msra.mxu0 0.0
  %810 = vmatprep.subr.mxu0 0.0
  %811 = vmatpush1.msra.mxu0 0.0
  %812 = vmatprep.subr.mxu0 0.0
  %813 = vmatpush1.msra.mxu0 0.0
  %814 = vmatprep.subr.mxu0 0.0
  %815 = vmatpush1.msra.mxu0 0.0
  %816 = vmatprep.subr.mxu0 0.0
  %817 = vmatpush1.msra.mxu0 0.0
  %818 = vmatprep.subr.mxu0 0.0
  %819 = vmatpush1.msra.mxu0 0.0
  %820 = vmatprep.subr.mxu0 0.0
  %821 = vmatpush1.msra.mxu0 0.0
  %822 = vmatprep.subr.mxu0 0.0
  %823 = vmatpush1.msra.mxu0 0.0
  %824 = vmatprep.subr.mxu0 0.0
  %825 = vmatpush1.msra.mxu0 0.0
  %826 = vmatprep.subr.mxu0 0.0
  %827 = vmatpush1.msra.mxu0 0.0
  %828 = vmatprep.subr.mxu0 0.0
  %829 = vmatpush1.msra.mxu0 0.0
  %830 = vmatprep.subr.mxu0 0.0
  %831 = vmatpush1.msra.mxu0 0.0
  %832 = vmatprep.subr.mxu0 0.0
  %833 = vmatpush1.msra.mxu0 0.0
  %834 = vmatprep.subr.mxu0 0.0
  %835 = vmatpush1.msra.mxu0 0.0
  %836 = vmatprep.subr.mxu0 0.0
  %837 = vmatpush1.msra.mxu0 0.0
  %838 = vmatprep.subr.mxu0 0.0
  %839 = vmatpush1.msra.mxu0 0.0
  %840 = vmatprep.subr.mxu0 0.0
  %841 = vmatpush1.msra.mxu0 0.0
  %842 = vmatprep.subr.mxu0 0.0
  %843 = vmatpush1.msra.mxu0 0.0
  %844 = vmatprep.subr.mxu0 0.0
  %845 = vmatpush1.msra.mxu0 0.0
  %846 = vmatprep.subr.mxu0 0.0
  %847 = vmatpush1.msra.mxu0 0.0
  %848 = vmatprep.subr.mxu0 0.0
  %849 = vmatpush1.msra.mxu0 0.0
  %850 = vmatprep.subr.mxu0 0.0
  %851 = vmatpush1.msra.mxu0 0.0
  %852 = vmatprep.subr.mxu0 0.0
  %853 = vmatpush1.msra.mxu0 0.0
  %854 = vmatprep.subr.mxu0 0.0
  %855 = vmatpush1.msra.mxu0 0.0
  %856 = vmatprep.subr.mxu0 0.0
  %857 = vmatpush1.msra.mxu0 0.0
  %858 = vmatprep.subr.mxu0 0.0
  %859 = vmatpush1.msra.mxu0 0.0
  %860 = vmatprep.subr.mxu0 0.0
  %861 = vmatpush1.msra.mxu0 0.0
  %862 = vmatprep.mubr.f32.mxu0 0.0
  %863 = vmatmul.mubr.f32.gmra.mrb[0].mxu0 %v793
  %v864 = vpop.f32.mrb[0].mxu0
  %v865 = vadd.f32 %v791, %v864
  %v866 = vpop.f32.mrb[0].mxu0
  %867 = vmatprep.mubr.f32.mxu0 0.0
  %868 = vmatmul.mubr.f32.gmra.mrb[0].mxu0 %v796
  %v869 = vpop.f32.mrb[0].mxu0
  %v870 = vadd.f32 %v791, %v869
  %v871 = vpop.f32.mrb[0].mxu0
  %872 = vdwg.mxu0
  %v873 = vmax.f32 %v865, 0.0
  %v874 = vmax.f32 %v870, 0.0
  %v875 = vld [vmem:[%s8] sm:$0xff]
  %v876 = vld [vmem:[%s8 + $0x8] sm:$0xff]
  %v877 = vld [vmem:[%s8 + $0x10] sm:$0xff]
  %v878 = vld [vmem:[%s8 + $0x18] sm:$0xff]
  %v879 = vld [vmem:[%s8 + $0x20] sm:$0xff]
  %v880 = vld [vmem:[%s8 + $0x28] sm:$0xff]
  %v881 = vld [vmem:[%s8 + $0x30] sm:$0xff]
  %v882 = vld [vmem:[%s8 + $0x38] sm:$0xff]
  %v883 = vld [vmem:[%s8 + $0x40] sm:$0xff]
  %v884 = vld [vmem:[%s8 + $0x48] sm:$0xff]
  %v885 = vld [vmem:[%s8 + $0x50] sm:$0xff]
  %v886 = vld [vmem:[%s8 + $0x58] sm:$0xff]
  %v887 = vld [vmem:[%s8 + $0x60] sm:$0xff]
  %v888 = vld [vmem:[%s8 + $0x68] sm:$0xff]
  %v889 = vld [vmem:[%s8 + $0x70] sm:$0xff]
  %v890 = vld [vmem:[%s8 + $0x78] sm:$0xff]
  %v891 = vlaneseq
  %v892 = vshrl.u32 %v891, 7
  %v893 = vsub.s32 7, %v892
  %v894 = vrot.slane %v82, %v893
  %895 = vmatprep.subr.mxu0 0.0
  %896 = vmatpush1.msra.mxu0 %v875
  %897 = vmatprep.subr.mxu0 0.0
  %898 = vmatpush1.msra.mxu0 %v876
  %899 = vmatprep.subr.mxu0 0.0
  %900 = vmatpush1.msra.mxu0 %v877
  %901 = vmatprep.subr.mxu0 0.0
  %902 = vmatpush1.msra.mxu0 %v878
  %903 = vmatprep.subr.mxu0 0.0
  %904 = vmatpush1.msra.mxu0 %v879
  %905 = vmatprep.subr.mxu0 0.0
  %906 = vmatpush1.msra.mxu0 %v880
  %907 = vmatprep.subr.mxu0 0.0
  %908 = vmatpush1.msra.mxu0 %v881
  %909 = vmatprep.subr.mxu0 0.0
  %910 = vmatpush1.msra.mxu0 %v882
  %911 = vmatprep.subr.mxu0 0.0
  %912 = vmatpush1.msra.mxu0 %v883
  %913 = vmatprep.subr.mxu0 0.0
  %914 = vmatpush1.msra.mxu0 %v884
  %915 = vmatprep.subr.mxu0 0.0
  %916 = vmatpush1.msra.mxu0 %v885
  %917 = vmatprep.subr.mxu0 0.0
  %918 = vmatpush1.msra.mxu0 %v886
  %919 = vmatprep.subr.mxu0 0.0
  %920 = vmatpush1.msra.mxu0 %v887
  %921 = vmatprep.subr.mxu0 0.0
  %922 = vmatpush1.msra.mxu0 %v888
  %923 = vmatprep.subr.mxu0 0.0
  %924 = vmatpush1.msra.mxu0 %v889
  %925 = vmatprep.subr.mxu0 0.0
  %926 = vmatpush1.msra.mxu0 %v890
  %927 = vmatprep.subr.mxu0 0.0
  %928 = vmatpush1.msra.mxu0 0.0
  %929 = vmatprep.subr.mxu0 0.0
  %930 = vmatpush1.msra.mxu0 0.0
  %931 = vmatprep.subr.mxu0 0.0
  %932 = vmatpush1.msra.mxu0 0.0
  %933 = vmatprep.subr.mxu0 0.0
  %934 = vmatpush1.msra.mxu0 0.0
  %935 = vmatprep.subr.mxu0 0.0
  %936 = vmatpush1.msra.mxu0 0.0
  %937 = vmatprep.subr.mxu0 0.0
  %938 = vmatpush1.msra.mxu0 0.0
  %939 = vmatprep.subr.mxu0 0.0
  %940 = vmatpush1.msra.mxu0 0.0
  %941 = vmatprep.subr.mxu0 0.0
  %942 = vmatpush1.msra.mxu0 0.0
  %943 = vmatprep.subr.mxu0 0.0
  %944 = vmatpush1.msra.mxu0 0.0
  %945 = vmatprep.subr.mxu0 0.0
  %946 = vmatpush1.msra.mxu0 0.0
  %947 = vmatprep.subr.mxu0 0.0
  %948 = vmatpush1.msra.mxu0 0.0
  %949 = vmatprep.subr.mxu0 0.0
  %950 = vmatpush1.msra.mxu0 0.0
  %951 = vmatprep.subr.mxu0 0.0
  %952 = vmatpush1.msra.mxu0 0.0
  %953 = vmatprep.subr.mxu0 0.0
  %954 = vmatpush1.msra.mxu0 0.0
  %955 = vmatprep.subr.mxu0 0.0
  %956 = vmatpush1.msra.mxu0 0.0
  %957 = vmatprep.subr.mxu0 0.0
  %958 = vmatpush1.msra.mxu0 0.0
  %959 = vmatprep.mubr.f32.mxu0 0.0
  %960 = vmatmul.mubr.f32.gmra.mrb[0].mxu0 %v873
  %v961 = vpop.f32.mrb[0].mxu0
  %v962 = vadd.f32 %v894, %v961
  %v963 = vpop.f32.mrb[0].mxu0
  %964 = vmatprep.mubr.f32.mxu0 0.0
  %965 = vmatmul.mubr.f32.gmra.mrb[0].mxu0 %v874
  %v966 = vpop.f32.mrb[0].mxu0
  %v967 = vadd.f32 %v894, %v966
  %v968 = vpop.f32.mrb[0].mxu0
  %969 = vdwg.mxu0
  %v970 = vadd.f32 %v782, %v962
  %v971 = vadd.f32 %v783, %v967
  %v972 = vsel %vm92, %v970, 0.0
  %973 = vadd.xlane.f32.xlu0 %v972
  %v974 = vpop.xlane.xlu0 %973
  %v975 = vsel %vm92, %v971, 0.0
  %976 = vadd.xlane.f32.xlu0 %v975
  %v977 = vpop.xlane.xlu0 %976
  %v978 = vmul.f32 %v974, %v751
  %v979 = vmul.f32 %v977, %v751
  %v980 = vsub.f32 %v970, %v978
  %v981 = vsub.f32 %v971, %v979
  %v982 = vmul.f32 %v980, %v980
  %v983 = vmul.f32 %v981, %v981
  %v984 = vsel %vm92, %v982, 0.0
  %985 = vadd.xlane.f32.xlu0 %v984
  %v986 = vpop.xlane.xlu0 %985
  %v987 = vsel %vm92, %v983, 0.0
  %988 = vadd.xlane.f32.xlu0 %v987
  %v989 = vpop.xlane.xlu0 %988
  %v990 = vmul.f32 %v986, %v751
  %v991 = vmul.f32 %v989, %v751
  %v992 = vadd.f32 %v990, 1e-05
  %v993 = vadd.f32 %v991, 1e-05
  %v994 = vrsqrt.pop %v992
  %v995 = vrsqrt.pop %v993
  %v996 = vmul.f32 %v980, %v994
  %v997 = vmul.f32 %v981, %v995
  %v998 = vlaneseq
  %v999 = vshrl.u32 %v998, 7
  %v1000 = vsub.s32 0, %v999
  %v1001 = vrot.slane %v83, %v1000
  %v1002 = vmul.f32 %v996, %v1001
  %v1003 = vmul.f32 %v997, %v1001
  %v1004 = vlaneseq
  %v1005 = vshrl.u32 %v1004, 7
  %v1006 = vsub.s32 1, %v1005
  %v1007 = vrot.slane %v83, %v1006
  %v1008 = vadd.f32 %v1002, %v1007
  %v1009 = vadd.f32 %v1003, %v1007
  %s1010 = scalar_lea.vmem %s9, 16
  %v1011 = vld [vmem:[%s1010] sm:$0xff]
  %v1012 = vld [vmem:[%s1010 + $0x8] sm:$0x3]
  %s1013 = scalar_lea.vmem %s5, 96
  %v1014 = vld [vmem:[%s1013] sm:$0xff]
  %v1015 = vld [vmem:[%s1013 + $0x8] sm:$0xff]
  %v1016 = vld [vmem:[%s1013 + $0x10] sm:$0xff]
  %v1017 = vld [vmem:[%s1013 + $0x18] sm:$0xff]
  %v1018 = vlaneseq
  %v1019 = vshrl.u32 %v1018, 7
  %v1020 = vsub.s32 0, %v1019
  %v1021 = vrot.slane %v1011, %v1020
  %v1023 = vsel %vm92, %v1008, 0
  %v1026 = vsel %vm92, %v1009, 0
  %1028 = vmatprep.subr.mxu0 0.0
  %1029 = vmatpush1.msra.mxu0 %v1014
  %1030 = vmatprep.subr.mxu0 0.0
  %1031 = vmatpush1.msra.mxu0 %v1015
  %1032 = vmatprep.subr.mxu0 0.0
  %1033 = vmatpush1.msra.mxu0 %v1016
  %1034 = vmatprep.subr.mxu0 0.0
  %1035 = vmatpush1.msra.mxu0 %v1017
  %1036 = vmatprep.subr.mxu0 0.0
  %1037 = vmatpush1.msra.mxu0 0.0
  %1038 = vmatprep.subr.mxu0 0.0
  %1039 = vmatpush1.msra.mxu0 0.0
  %1040 = vmatprep.subr.mxu0 0.0
  %1041 = vmatpush1.msra.mxu0 0.0
  %1042 = vmatprep.subr.mxu0 0.0
  %1043 = vmatpush1.msra.mxu0 0.0
  %1044 = vmatprep.subr.mxu0 0.0
  %1045 = vmatpush1.msra.mxu0 0.0
  %1046 = vmatprep.subr.mxu0 0.0
  %1047 = vmatpush1.msra.mxu0 0.0
  %1048 = vmatprep.subr.mxu0 0.0
  %1049 = vmatpush1.msra.mxu0 0.0
  %1050 = vmatprep.subr.mxu0 0.0
  %1051 = vmatpush1.msra.mxu0 0.0
  %1052 = vmatprep.subr.mxu0 0.0
  %1053 = vmatpush1.msra.mxu0 0.0
  %1054 = vmatprep.subr.mxu0 0.0
  %1055 = vmatpush1.msra.mxu0 0.0
  %1056 = vmatprep.subr.mxu0 0.0
  %1057 = vmatpush1.msra.mxu0 0.0
  %1058 = vmatprep.subr.mxu0 0.0
  %1059 = vmatpush1.msra.mxu0 0.0
  %1060 = vmatprep.subr.mxu0 0.0
  %1061 = vmatpush1.msra.mxu0 0.0
  %1062 = vmatprep.subr.mxu0 0.0
  %1063 = vmatpush1.msra.mxu0 0.0
  %1064 = vmatprep.subr.mxu0 0.0
  %1065 = vmatpush1.msra.mxu0 0.0
  %1066 = vmatprep.subr.mxu0 0.0
  %1067 = vmatpush1.msra.mxu0 0.0
  %1068 = vmatprep.subr.mxu0 0.0
  %1069 = vmatpush1.msra.mxu0 0.0
  %1070 = vmatprep.subr.mxu0 0.0
  %1071 = vmatpush1.msra.mxu0 0.0
  %1072 = vmatprep.subr.mxu0 0.0
  %1073 = vmatpush1.msra.mxu0 0.0
  %1074 = vmatprep.subr.mxu0 0.0
  %1075 = vmatpush1.msra.mxu0 0.0
  %1076 = vmatprep.subr.mxu0 0.0
  %1077 = vmatpush1.msra.mxu0 0.0
  %1078 = vmatprep.subr.mxu0 0.0
  %1079 = vmatpush1.msra.mxu0 0.0
  %1080 = vmatprep.subr.mxu0 0.0
  %1081 = vmatpush1.msra.mxu0 0.0
  %1082 = vmatprep.subr.mxu0 0.0
  %1083 = vmatpush1.msra.mxu0 0.0
  %1084 = vmatprep.subr.mxu0 0.0
  %1085 = vmatpush1.msra.mxu0 0.0
  %1086 = vmatprep.subr.mxu0 0.0
  %1087 = vmatpush1.msra.mxu0 0.0
  %1088 = vmatprep.subr.mxu0 0.0
  %1089 = vmatpush1.msra.mxu0 0.0
  %1090 = vmatprep.subr.mxu0 0.0
  %1091 = vmatpush1.msra.mxu0 0.0
  %1092 = vmatprep.mubr.f32.mxu0 0.0
  %1093 = vmatmul.mubr.f32.gmra.mrb[0].mxu0 %v1023
  %v1094 = vpop.f32.mrb[0].mxu0
  %v1095 = vadd.f32 %v1021, %v1094
  %v1096 = vpop.f32.mrb[0].mxu0
  %1097 = vmatprep.mubr.f32.mxu0 0.0
  %1098 = vmatmul.mubr.f32.gmra.mrb[0].mxu0 %v1026
  %v1099 = vpop.f32.mrb[0].mxu0
  %v1100 = vadd.f32 %v1021, %v1099
  %v1101 = vpop.f32.mrb[0].mxu0
  %1102 = vdwg.mxu0
  %s1103 = scalar_lea.vmem %s5, 128
  %v1104 = vld [vmem:[%s1103] sm:$0xff]
  %v1105 = vld [vmem:[%s1103 + $0x8] sm:$0xff]
  %v1106 = vld [vmem:[%s1103 + $0x10] sm:$0xff]
  %v1107 = vld [vmem:[%s1103 + $0x18] sm:$0xff]
  %v1108 = vlaneseq
  %v1109 = vshrl.u32 %v1108, 7
  %v1110 = vsub.s32 1, %v1109
  %v1111 = vrot.slane %v1011, %v1110
  %1112 = vmatprep.subr.mxu0 0.0
  %1113 = vmatpush1.msra.mxu0 %v1104
  %1114 = vmatprep.subr.mxu0 0.0
  %1115 = vmatpush1.msra.mxu0 %v1105
  %1116 = vmatprep.subr.mxu0 0.0
  %1117 = vmatpush1.msra.mxu0 %v1106
  %1118 = vmatprep.subr.mxu0 0.0
  %1119 = vmatpush1.msra.mxu0 %v1107
  %1120 = vmatprep.subr.mxu0 0.0
  %1121 = vmatpush1.msra.mxu0 0.0
  %1122 = vmatprep.subr.mxu0 0.0
  %1123 = vmatpush1.msra.mxu0 0.0
  %1124 = vmatprep.subr.mxu0 0.0
  %1125 = vmatpush1.msra.mxu0 0.0
  %1126 = vmatprep.subr.mxu0 0.0
  %1127 = vmatpush1.msra.mxu0 0.0
  %1128 = vmatprep.subr.mxu0 0.0
  %1129 = vmatpush1.msra.mxu0 0.0
  %1130 = vmatprep.subr.mxu0 0.0
  %1131 = vmatpush1.msra.mxu0 0.0
  %1132 = vmatprep.subr.mxu0 0.0
  %1133 = vmatpush1.msra.mxu0 0.0
  %1134 = vmatprep.subr.mxu0 0.0
  %1135 = vmatpush1.msra.mxu0 0.0
  %1136 = vmatprep.subr.mxu0 0.0
  %1137 = vmatpush1.msra.mxu0 0.0
  %1138 = vmatprep.subr.mxu0 0.0
  %1139 = vmatpush1.msra.mxu0 0.0
  %1140 = vmatprep.subr.mxu0 0.0
  %1141 = vmatpush1.msra.mxu0 0.0
  %1142 = vmatprep.subr.mxu0 0.0
  %1143 = vmatpush1.msra.mxu0 0.0
  %1144 = vmatprep.subr.mxu0 0.0
  %1145 = vmatpush1.msra.mxu0 0.0
  %1146 = vmatprep.subr.mxu0 0.0
  %1147 = vmatpush1.msra.mxu0 0.0
  %1148 = vmatprep.subr.mxu0 0.0
  %1149 = vmatpush1.msra.mxu0 0.0
  %1150 = vmatprep.subr.mxu0 0.0
  %1151 = vmatpush1.msra.mxu0 0.0
  %1152 = vmatprep.subr.mxu0 0.0
  %1153 = vmatpush1.msra.mxu0 0.0
  %1154 = vmatprep.subr.mxu0 0.0
  %1155 = vmatpush1.msra.mxu0 0.0
  %1156 = vmatprep.subr.mxu0 0.0
  %1157 = vmatpush1.msra.mxu0 0.0
  %1158 = vmatprep.subr.mxu0 0.0
  %1159 = vmatpush1.msra.mxu0 0.0
  %1160 = vmatprep.subr.mxu0 0.0
  %1161 = vmatpush1.msra.mxu0 0.0
  %1162 = vmatprep.subr.mxu0 0.0
  %1163 = vmatpush1.msra.mxu0 0.0
  %1164 = vmatprep.subr.mxu0 0.0
  %1165 = vmatpush1.msra.mxu0 0.0
  %1166 = vmatprep.subr.mxu0 0.0
  %1167 = vmatpush1.msra.mxu0 0.0
  %1168 = vmatprep.subr.mxu0 0.0
  %1169 = vmatpush1.msra.mxu0 0.0
  %1170 = vmatprep.subr.mxu0 0.0
  %1171 = vmatpush1.msra.mxu0 0.0
  %1172 = vmatprep.subr.mxu0 0.0
  %1173 = vmatpush1.msra.mxu0 0.0
  %1174 = vmatprep.subr.mxu0 0.0
  %1175 = vmatpush1.msra.mxu0 0.0
  %1176 = vmatprep.mubr.f32.mxu0 0.0
  %1177 = vmatmul.mubr.f32.gmra.mrb[0].mxu0 %v1023
  %v1178 = vpop.f32.mrb[0].mxu0
  %v1179 = vadd.f32 %v1111, %v1178
  %v1180 = vpop.f32.mrb[0].mxu0
  %1181 = vmatprep.mubr.f32.mxu0 0.0
  %1182 = vmatmul.mubr.f32.gmra.mrb[0].mxu0 %v1026
  %v1183 = vpop.f32.mrb[0].mxu0
  %v1184 = vadd.f32 %v1111, %v1183
  %v1185 = vpop.f32.mrb[0].mxu0
  %1186 = vdwg.mxu0
  %s1187 = scalar_lea.vmem %s5, 160
  %v1188 = vld [vmem:[%s1187] sm:$0xff]
  %v1189 = vld [vmem:[%s1187 + $0x8] sm:$0xff]
  %v1190 = vld [vmem:[%s1187 + $0x10] sm:$0xff]
  %v1191 = vld [vmem:[%s1187 + $0x18] sm:$0xff]
  %v1192 = vlaneseq
  %v1193 = vshrl.u32 %v1192, 7
  %v1194 = vsub.s32 2, %v1193
  %v1195 = vrot.slane %v1011, %v1194
  %1196 = vmatprep.subr.mxu0 0.0
  %1197 = vmatpush1.msra.mxu0 %v1188
  %1198 = vmatprep.subr.mxu0 0.0
  %1199 = vmatpush1.msra.mxu0 %v1189
  %1200 = vmatprep.subr.mxu0 0.0
  %1201 = vmatpush1.msra.mxu0 %v1190
  %1202 = vmatprep.subr.mxu0 0.0
  %1203 = vmatpush1.msra.mxu0 %v1191
  %1204 = vmatprep.subr.mxu0 0.0
  %1205 = vmatpush1.msra.mxu0 0.0
  %1206 = vmatprep.subr.mxu0 0.0
  %1207 = vmatpush1.msra.mxu0 0.0
  %1208 = vmatprep.subr.mxu0 0.0
  %1209 = vmatpush1.msra.mxu0 0.0
  %1210 = vmatprep.subr.mxu0 0.0
  %1211 = vmatpush1.msra.mxu0 0.0
  %1212 = vmatprep.subr.mxu0 0.0
  %1213 = vmatpush1.msra.mxu0 0.0
  %1214 = vmatprep.subr.mxu0 0.0
  %1215 = vmatpush1.msra.mxu0 0.0
  %1216 = vmatprep.subr.mxu0 0.0
  %1217 = vmatpush1.msra.mxu0 0.0
  %1218 = vmatprep.subr.mxu0 0.0
  %1219 = vmatpush1.msra.mxu0 0.0
  %1220 = vmatprep.subr.mxu0 0.0
  %1221 = vmatpush1.msra.mxu0 0.0
  %1222 = vmatprep.subr.mxu0 0.0
  %1223 = vmatpush1.msra.mxu0 0.0
  %1224 = vmatprep.subr.mxu0 0.0
  %1225 = vmatpush1.msra.mxu0 0.0
  %1226 = vmatprep.subr.mxu0 0.0
  %1227 = vmatpush1.msra.mxu0 0.0
  %1228 = vmatprep.subr.mxu0 0.0
  %1229 = vmatpush1.msra.mxu0 0.0
  %1230 = vmatprep.subr.mxu0 0.0
  %1231 = vmatpush1.msra.mxu0 0.0
  %1232 = vmatprep.subr.mxu0 0.0
  %1233 = vmatpush1.msra.mxu0 0.0
  %1234 = vmatprep.subr.mxu0 0.0
  %1235 = vmatpush1.msra.mxu0 0.0
  %1236 = vmatprep.subr.mxu0 0.0
  %1237 = vmatpush1.msra.mxu0 0.0
  %1238 = vmatprep.subr.mxu0 0.0
  %1239 = vmatpush1.msra.mxu0 0.0
  %1240 = vmatprep.subr.mxu0 0.0
  %1241 = vmatpush1.msra.mxu0 0.0
  %1242 = vmatprep.subr.mxu0 0.0
  %1243 = vmatpush1.msra.mxu0 0.0
  %1244 = vmatprep.subr.mxu0 0.0
  %1245 = vmatpush1.msra.mxu0 0.0
  %1246 = vmatprep.subr.mxu0 0.0
  %1247 = vmatpush1.msra.mxu0 0.0
  %1248 = vmatprep.subr.mxu0 0.0
  %1249 = vmatpush1.msra.mxu0 0.0
  %1250 = vmatprep.subr.mxu0 0.0
  %1251 = vmatpush1.msra.mxu0 0.0
  %1252 = vmatprep.subr.mxu0 0.0
  %1253 = vmatpush1.msra.mxu0 0.0
  %1254 = vmatprep.subr.mxu0 0.0
  %1255 = vmatpush1.msra.mxu0 0.0
  %1256 = vmatprep.subr.mxu0 0.0
  %1257 = vmatpush1.msra.mxu0 0.0
  %1258 = vmatprep.subr.mxu0 0.0
  %1259 = vmatpush1.msra.mxu0 0.0
  %1260 = vmatprep.mubr.f32.mxu0 0.0
  %1261 = vmatmul.mubr.f32.gmra.mrb[0].mxu0 %v1023
  %v1262 = vpop.f32.mrb[0].mxu0
  %v1263 = vadd.f32 %v1195, %v1262
  %v1264 = vpop.f32.mrb[0].mxu0
  %1265 = vmatprep.mubr.f32.mxu0 0.0
  %1266 = vmatmul.mubr.f32.gmra.mrb[0].mxu0 %v1026
  %v1267 = vpop.f32.mrb[0].mxu0
  %v1268 = vadd.f32 %v1195, %v1267
  %v1269 = vpop.f32.mrb[0].mxu0
  %1270 = vdwg.mxu0
  %v1271 = vsel %vm344, %v1179, 0.0
  %v1272 = vsel %vm344, %v1184, 0.0
  %v1273 = vsel %vm344, %v1263, 0.0
  %v1274 = vsel %vm344, %v1268, 0.0
  %v1275 = vsel %vm351, %v1179, 0.0
  %v1276 = vsel %vm351, %v1184, 0.0
  %v1277 = vsel %vm351, %v1263, 0.0
  %v1278 = vsel %vm351, %v1268, 0.0
  %v1279 = vsel %vm358, %v1179, 0.0
  %v1280 = vsel %vm358, %v1184, 0.0
  %v1281 = vsel %vm358, %v1263, 0.0
  %v1282 = vsel %vm358, %v1268, 0.0
  %v1283 = vsel %vm365, %v1179, 0.0
  %v1284 = vsel %vm365, %v1184, 0.0
  %v1285 = vsel %vm365, %v1263, 0.0
  %v1286 = vsel %vm365, %v1268, 0.0
  %v1288 = vsel %vm92, %v1095, 0
  %v1291 = vsel %vm92, %v1100, 0
  %v1294 = vsel %vm92, %v1271, 0
  %v1297 = vsel %vm92, %v1272, 0
  %v1300 = vsel %vm92, %v1275, 0
  %v1303 = vsel %vm92, %v1276, 0
  %v1306 = vsel %vm92, %v1279, 0
  %v1309 = vsel %vm92, %v1280, 0
  %v1312 = vsel %vm92, %v1283, 0
  %v1315 = vsel %vm92, %v1284, 0
  %1317 = vmatprep.subr.mxu0 0.0
  %1318 = vmatpush1.xpose.msra.mxu0 %v1294
  %1319 = vmatprep.subr.mxu0 0.0
  %1320 = vmatpush1.xpose.msra.mxu0 %v1297
  %1321 = vmatprep.subr.mxu0 0.0
  %1322 = vmatpush1.xpose.msra.mxu0 %v1300
  %1323 = vmatprep.subr.mxu0 0.0
  %1324 = vmatpush1.xpose.msra.mxu0 %v1303
  %1325 = vmatprep.subr.mxu0 0.0
  %1326 = vmatpush1.xpose.msra.mxu0 %v1306
  %1327 = vmatprep.subr.mxu0 0.0
  %1328 = vmatpush1.xpose.msra.mxu0 %v1309
  %1329 = vmatprep.subr.mxu0 0.0
  %1330 = vmatpush1.xpose.msra.mxu0 %v1312
  %1331 = vmatprep.subr.mxu0 0.0
  %1332 = vmatpush1.xpose.msra.mxu0 %v1315
  %1333 = vmatprep.subr.mxu0 0.0
  %1334 = vmatpush1.xpose.msra.mxu0 0.0
  %1335 = vmatprep.subr.mxu0 0.0
  %1336 = vmatpush1.xpose.msra.mxu0 0.0
  %1337 = vmatprep.subr.mxu0 0.0
  %1338 = vmatpush1.xpose.msra.mxu0 0.0
  %1339 = vmatprep.subr.mxu0 0.0
  %1340 = vmatpush1.xpose.msra.mxu0 0.0
  %1341 = vmatprep.subr.mxu0 0.0
  %1342 = vmatpush1.xpose.msra.mxu0 0.0
  %1343 = vmatprep.subr.mxu0 0.0
  %1344 = vmatpush1.xpose.msra.mxu0 0.0
  %1345 = vmatprep.subr.mxu0 0.0
  %1346 = vmatpush1.xpose.msra.mxu0 0.0
  %1347 = vmatprep.subr.mxu0 0.0
  %1348 = vmatpush1.xpose.msra.mxu0 0.0
  %1349 = vmatprep.subr.mxu0 0.0
  %1350 = vmatpush1.xpose.msra.mxu0 0.0
  %1351 = vmatprep.subr.mxu0 0.0
  %1352 = vmatpush1.xpose.msra.mxu0 0.0
  %1353 = vmatprep.subr.mxu0 0.0
  %1354 = vmatpush1.xpose.msra.mxu0 0.0
  %1355 = vmatprep.subr.mxu0 0.0
  %1356 = vmatpush1.xpose.msra.mxu0 0.0
  %1357 = vmatprep.subr.mxu0 0.0
  %1358 = vmatpush1.xpose.msra.mxu0 0.0
  %1359 = vmatprep.subr.mxu0 0.0
  %1360 = vmatpush1.xpose.msra.mxu0 0.0
  %1361 = vmatprep.subr.mxu0 0.0
  %1362 = vmatpush1.xpose.msra.mxu0 0.0
  %1363 = vmatprep.subr.mxu0 0.0
  %1364 = vmatpush1.xpose.msra.mxu0 0.0
  %1365 = vmatprep.subr.mxu0 0.0
  %1366 = vmatpush1.xpose.msra.mxu0 0.0
  %1367 = vmatprep.subr.mxu0 0.0
  %1368 = vmatpush1.xpose.msra.mxu0 0.0
  %1369 = vmatprep.subr.mxu0 0.0
  %1370 = vmatpush1.xpose.msra.mxu0 0.0
  %1371 = vmatprep.subr.mxu0 0.0
  %1372 = vmatpush1.xpose.msra.mxu0 0.0
  %1373 = vmatprep.subr.mxu0 0.0
  %1374 = vmatpush1.xpose.msra.mxu0 0.0
  %1375 = vmatprep.subr.mxu0 0.0
  %1376 = vmatpush1.xpose.msra.mxu0 0.0
  %1377 = vmatprep.subr.mxu0 0.0
  %1378 = vmatpush1.xpose.msra.mxu0 0.0
  %1379 = vmatprep.subr.mxu0 0.0
  %1380 = vmatpush1.xpose.msra.mxu0 0.0
  %1381 = vmatprep.mubr.f32.mxu0 0.0
  %1382 = vmatmul.mubr.f32.gmra.mrb[0].mxu0 %v1288
  %v1383 = vpop.f32.mrb[0].mxu0
  %v1384 = vadd.f32 %v70, %v1383
  %v1385 = vpop.f32.mrb[0].mxu0
  %1386 = vmatprep.mubr.f32.mxu0 0.0
  %1387 = vmatmul.mubr.f32.gmra.mrb[0].mxu0 %v1291
  %v1388 = vpop.f32.mrb[0].mxu0
  %v1389 = vadd.f32 %v71, %v1388
  %v1390 = vpop.f32.mrb[0].mxu0
  %1391 = vdwg.mxu0
  %v1392 = vsel %vm475, %v1384, -inf
  %1393 = vmax.xlane.f32.xlu0 %v1392
  %v1394 = vpop.xlane.xlu0 %1393
  %v1395 = vsel %vm475, %v1389, -inf
  %1396 = vmax.xlane.f32.xlu0 %v1395
  %v1397 = vpop.xlane.xlu0 %1396
  %v1398 = vsub.f32 %v1384, %v1394
  %v1399 = vsub.f32 %v1389, %v1397
  %v1400 = vmul.f32 %v1398, 1.442695
  %v1401 = vpow.pop %v1400
  %v1402 = vmul.f32 %v1399, 1.442695
  %v1403 = vpow.pop %v1402
  %v1405 = vsel %vm475, %v1401, 0
  %v1408 = vsel %vm475, %v1403, 0
  %1410 = vmatprep.subr.mxu0 0.0
  %1411 = vmatpush1.msra.mxu0 %v72
  %1412 = vmatprep.subr.mxu0 0.0
  %1413 = vmatpush1.msra.mxu0 %v73
  %1414 = vmatprep.subr.mxu0 0.0
  %1415 = vmatpush1.msra.mxu0 %v74
  %1416 = vmatprep.subr.mxu0 0.0
  %1417 = vmatpush1.msra.mxu0 %v75
  %1418 = vmatprep.subr.mxu0 0.0
  %1419 = vmatpush1.msra.mxu0 %v76
  %1420 = vmatprep.subr.mxu0 0.0
  %1421 = vmatpush1.msra.mxu0 %v77
  %1422 = vmatprep.subr.mxu0 0.0
  %1423 = vmatpush1.msra.mxu0 %v78
  %1424 = vmatprep.subr.mxu0 0.0
  %1425 = vmatpush1.msra.mxu0 %v79
  %1426 = vmatprep.subr.mxu0 0.0
  %1427 = vmatpush1.msra.mxu0 0.0
  %1428 = vmatprep.subr.mxu0 0.0
  %1429 = vmatpush1.msra.mxu0 0.0
  %1430 = vmatprep.subr.mxu0 0.0
  %1431 = vmatpush1.msra.mxu0 0.0
  %1432 = vmatprep.subr.mxu0 0.0
  %1433 = vmatpush1.msra.mxu0 0.0
  %1434 = vmatprep.subr.mxu0 0.0
  %1435 = vmatpush1.msra.mxu0 0.0
  %1436 = vmatprep.subr.mxu0 0.0
  %1437 = vmatpush1.msra.mxu0 0.0
  %1438 = vmatprep.subr.mxu0 0.0
  %1439 = vmatpush1.msra.mxu0 0.0
  %1440 = vmatprep.subr.mxu0 0.0
  %1441 = vmatpush1.msra.mxu0 0.0
  %1442 = vmatprep.subr.mxu0 0.0
  %1443 = vmatpush1.msra.mxu0 0.0
  %1444 = vmatprep.subr.mxu0 0.0
  %1445 = vmatpush1.msra.mxu0 0.0
  %1446 = vmatprep.subr.mxu0 0.0
  %1447 = vmatpush1.msra.mxu0 0.0
  %1448 = vmatprep.subr.mxu0 0.0
  %1449 = vmatpush1.msra.mxu0 0.0
  %1450 = vmatprep.subr.mxu0 0.0
  %1451 = vmatpush1.msra.mxu0 0.0
  %1452 = vmatprep.subr.mxu0 0.0
  %1453 = vmatpush1.msra.mxu0 0.0
  %1454 = vmatprep.subr.mxu0 0.0
  %1455 = vmatpush1.msra.mxu0 0.0
  %1456 = vmatprep.subr.mxu0 0.0
  %1457 = vmatpush1.msra.mxu0 0.0
  %1458 = vmatprep.subr.mxu0 0.0
  %1459 = vmatpush1.msra.mxu0 0.0
  %1460 = vmatprep.subr.mxu0 0.0
  %1461 = vmatpush1.msra.mxu0 0.0
  %1462 = vmatprep.subr.mxu0 0.0
  %1463 = vmatpush1.msra.mxu0 0.0
  %1464 = vmatprep.subr.mxu0 0.0
  %1465 = vmatpush1.msra.mxu0 0.0
  %1466 = vmatprep.subr.mxu0 0.0
  %1467 = vmatpush1.msra.mxu0 0.0
  %1468 = vmatprep.subr.mxu0 0.0
  %1469 = vmatpush1.msra.mxu0 0.0
  %1470 = vmatprep.subr.mxu0 0.0
  %1471 = vmatpush1.msra.mxu0 0.0
  %1472 = vmatprep.subr.mxu0 0.0
  %1473 = vmatpush1.msra.mxu0 0.0
  %1474 = vmatprep.mubr.f32.mxu0 0.0
  %1475 = vmatmul.mubr.f32.gmra.mrb[0].mxu0 %v1405
  %v1476 = vpop.f32.mrb[0].mxu0
  %v1477 = vadd.f32 0.0, %v1476
  %v1478 = vpop.f32.mrb[0].mxu0
  %1479 = vmatprep.mubr.f32.mxu0 0.0
  %1480 = vmatmul.mubr.f32.gmra.mrb[0].mxu0 %v1408
  %v1481 = vpop.f32.mrb[0].mxu0
  %v1482 = vadd.f32 0.0, %v1481
  %v1483 = vpop.f32.mrb[0].mxu0
  %1484 = vdwg.mxu0
  %v1485 = vrcp.pop %v1477
  %v1486 = vmul.f32 %v1401, %v1485
  %v1487 = vrcp.pop %v1482
  %v1488 = vmul.f32 %v1403, %v1487
  %v1490 = vsel %vm475, %v1486, 0
  %v1493 = vsel %vm475, %v1488, 0
  %1495 = vmatprep.subr.mxu0 0.0
  %1496 = vmatpush1.msra.mxu0 %v1273
  %1497 = vmatprep.subr.mxu0 0.0
  %1498 = vmatpush1.msra.mxu0 %v1274
  %1499 = vmatprep.subr.mxu0 0.0
  %1500 = vmatpush1.msra.mxu0 %v1277
  %1501 = vmatprep.subr.mxu0 0.0
  %1502 = vmatpush1.msra.mxu0 %v1278
  %1503 = vmatprep.subr.mxu0 0.0
  %1504 = vmatpush1.msra.mxu0 %v1281
  %1505 = vmatprep.subr.mxu0 0.0
  %1506 = vmatpush1.msra.mxu0 %v1282
  %1507 = vmatprep.subr.mxu0 0.0
  %1508 = vmatpush1.msra.mxu0 %v1285
  %1509 = vmatprep.subr.mxu0 0.0
  %1510 = vmatpush1.msra.mxu0 %v1286
  %1511 = vmatprep.subr.mxu0 0.0
  %1512 = vmatpush1.msra.mxu0 0.0
  %1513 = vmatprep.subr.mxu0 0.0
  %1514 = vmatpush1.msra.mxu0 0.0
  %1515 = vmatprep.subr.mxu0 0.0
  %1516 = vmatpush1.msra.mxu0 0.0
  %1517 = vmatprep.subr.mxu0 0.0
  %1518 = vmatpush1.msra.mxu0 0.0
  %1519 = vmatprep.subr.mxu0 0.0
  %1520 = vmatpush1.msra.mxu0 0.0
  %1521 = vmatprep.subr.mxu0 0.0
  %1522 = vmatpush1.msra.mxu0 0.0
  %1523 = vmatprep.subr.mxu0 0.0
  %1524 = vmatpush1.msra.mxu0 0.0
  %1525 = vmatprep.subr.mxu0 0.0
  %1526 = vmatpush1.msra.mxu0 0.0
  %1527 = vmatprep.subr.mxu0 0.0
  %1528 = vmatpush1.msra.mxu0 0.0
  %1529 = vmatprep.subr.mxu0 0.0
  %1530 = vmatpush1.msra.mxu0 0.0
  %1531 = vmatprep.subr.mxu0 0.0
  %1532 = vmatpush1.msra.mxu0 0.0
  %1533 = vmatprep.subr.mxu0 0.0
  %1534 = vmatpush1.msra.mxu0 0.0
  %1535 = vmatprep.subr.mxu0 0.0
  %1536 = vmatpush1.msra.mxu0 0.0
  %1537 = vmatprep.subr.mxu0 0.0
  %1538 = vmatpush1.msra.mxu0 0.0
  %1539 = vmatprep.subr.mxu0 0.0
  %1540 = vmatpush1.msra.mxu0 0.0
  %1541 = vmatprep.subr.mxu0 0.0
  %1542 = vmatpush1.msra.mxu0 0.0
  %1543 = vmatprep.subr.mxu0 0.0
  %1544 = vmatpush1.msra.mxu0 0.0
  %1545 = vmatprep.subr.mxu0 0.0
  %1546 = vmatpush1.msra.mxu0 0.0
  %1547 = vmatprep.subr.mxu0 0.0
  %1548 = vmatpush1.msra.mxu0 0.0
  %1549 = vmatprep.subr.mxu0 0.0
  %1550 = vmatpush1.msra.mxu0 0.0
  %1551 = vmatprep.subr.mxu0 0.0
  %1552 = vmatpush1.msra.mxu0 0.0
  %1553 = vmatprep.subr.mxu0 0.0
  %1554 = vmatpush1.msra.mxu0 0.0
  %1555 = vmatprep.subr.mxu0 0.0
  %1556 = vmatpush1.msra.mxu0 0.0
  %1557 = vmatprep.subr.mxu0 0.0
  %1558 = vmatpush1.msra.mxu0 0.0
  %1559 = vmatprep.mubr.f32.mxu0 0.0
  %1560 = vmatmul.mubr.f32.gmra.mrb[0].mxu0 %v1490
  %v1561 = vpop.f32.mrb[0].mxu0
  %v1562 = vadd.f32 0.0, %v1561
  %v1563 = vpop.f32.mrb[0].mxu0
  %1564 = vmatprep.mubr.f32.mxu0 0.0
  %1565 = vmatmul.mubr.f32.gmra.mrb[0].mxu0 %v1493
  %v1566 = vpop.f32.mrb[0].mxu0
  %v1567 = vadd.f32 0.0, %v1566
  %v1568 = vpop.f32.mrb[0].mxu0
  %1569 = vdwg.mxu0
  %s1570 = scalar_lea.vmem %s6, 32
  %v1571 = vld [vmem:[%s1570] sm:$0xff]
  %v1572 = vld [vmem:[%s1570 + $0x8] sm:$0xff]
  %v1573 = vld [vmem:[%s1570 + $0x10] sm:$0xff]
  %v1574 = vld [vmem:[%s1570 + $0x18] sm:$0xff]
  %v1575 = vlaneseq
  %v1576 = vshrl.u32 %v1575, 7
  %v1577 = vsub.s32 3, %v1576
  %v1578 = vrot.slane %v1011, %v1577
  %v1580 = vsel %vm92, %v1562, 0
  %v1583 = vsel %vm92, %v1567, 0
  %1585 = vmatprep.subr.mxu0 0.0
  %1586 = vmatpush1.msra.mxu0 %v1571
  %1587 = vmatprep.subr.mxu0 0.0
  %1588 = vmatpush1.msra.mxu0 %v1572
  %1589 = vmatprep.subr.mxu0 0.0
  %1590 = vmatpush1.msra.mxu0 %v1573
  %1591 = vmatprep.subr.mxu0 0.0
  %1592 = vmatpush1.msra.mxu0 %v1574
  %1593 = vmatprep.subr.mxu0 0.0
  %1594 = vmatpush1.msra.mxu0 0.0
  %1595 = vmatprep.subr.mxu0 0.0
  %1596 = vmatpush1.msra.mxu0 0.0
  %1597 = vmatprep.subr.mxu0 0.0
  %1598 = vmatpush1.msra.mxu0 0.0
  %1599 = vmatprep.subr.mxu0 0.0
  %1600 = vmatpush1.msra.mxu0 0.0
  %1601 = vmatprep.subr.mxu0 0.0
  %1602 = vmatpush1.msra.mxu0 0.0
  %1603 = vmatprep.subr.mxu0 0.0
  %1604 = vmatpush1.msra.mxu0 0.0
  %1605 = vmatprep.subr.mxu0 0.0
  %1606 = vmatpush1.msra.mxu0 0.0
  %1607 = vmatprep.subr.mxu0 0.0
  %1608 = vmatpush1.msra.mxu0 0.0
  %1609 = vmatprep.subr.mxu0 0.0
  %1610 = vmatpush1.msra.mxu0 0.0
  %1611 = vmatprep.subr.mxu0 0.0
  %1612 = vmatpush1.msra.mxu0 0.0
  %1613 = vmatprep.subr.mxu0 0.0
  %1614 = vmatpush1.msra.mxu0 0.0
  %1615 = vmatprep.subr.mxu0 0.0
  %1616 = vmatpush1.msra.mxu0 0.0
  %1617 = vmatprep.subr.mxu0 0.0
  %1618 = vmatpush1.msra.mxu0 0.0
  %1619 = vmatprep.subr.mxu0 0.0
  %1620 = vmatpush1.msra.mxu0 0.0
  %1621 = vmatprep.subr.mxu0 0.0
  %1622 = vmatpush1.msra.mxu0 0.0
  %1623 = vmatprep.subr.mxu0 0.0
  %1624 = vmatpush1.msra.mxu0 0.0
  %1625 = vmatprep.subr.mxu0 0.0
  %1626 = vmatpush1.msra.mxu0 0.0
  %1627 = vmatprep.subr.mxu0 0.0
  %1628 = vmatpush1.msra.mxu0 0.0
  %1629 = vmatprep.subr.mxu0 0.0
  %1630 = vmatpush1.msra.mxu0 0.0
  %1631 = vmatprep.subr.mxu0 0.0
  %1632 = vmatpush1.msra.mxu0 0.0
  %1633 = vmatprep.subr.mxu0 0.0
  %1634 = vmatpush1.msra.mxu0 0.0
  %1635 = vmatprep.subr.mxu0 0.0
  %1636 = vmatpush1.msra.mxu0 0.0
  %1637 = vmatprep.subr.mxu0 0.0
  %1638 = vmatpush1.msra.mxu0 0.0
  %1639 = vmatprep.subr.mxu0 0.0
  %1640 = vmatpush1.msra.mxu0 0.0
  %1641 = vmatprep.subr.mxu0 0.0
  %1642 = vmatpush1.msra.mxu0 0.0
  %1643 = vmatprep.subr.mxu0 0.0
  %1644 = vmatpush1.msra.mxu0 0.0
  %1645 = vmatprep.subr.mxu0 0.0
  %1646 = vmatpush1.msra.mxu0 0.0
  %1647 = vmatprep.subr.mxu0 0.0
  %1648 = vmatpush1.msra.mxu0 0.0
  %1649 = vmatprep.mubr.f32.mxu0 0.0
  %1650 = vmatmul.mubr.f32.gmra.mrb[0].mxu0 %v1580
  %v1651 = vpop.f32.mrb[0].mxu0
  %v1652 = vadd.f32 %v1578, %v1651
  %v1653 = vpop.f32.mrb[0].mxu0
  %1654 = vmatprep.mubr.f32.mxu0 0.0
  %1655 = vmatmul.mubr.f32.gmra.mrb[0].mxu0 %v1583
  %v1656 = vpop.f32.mrb[0].mxu0
  %v1657 = vadd.f32 %v1578, %v1656
  %v1658 = vpop.f32.mrb[0].mxu0
  %1659 = vdwg.mxu0
  %v1660 = vadd.f32 %v1008, %v1652
  %v1661 = vadd.f32 %v1009, %v1657
  %v1662 = vsel %vm92, %v1660, 0.0
  %1663 = vadd.xlane.f32.xlu0 %v1662
  %v1664 = vpop.xlane.xlu0 %1663
  %v1665 = vsel %vm92, %v1661, 0.0
  %1666 = vadd.xlane.f32.xlu0 %v1665
  %v1667 = vpop.xlane.xlu0 %1666
  %v1668 = vmul.f32 %v1664, %v751
  %v1669 = vmul.f32 %v1667, %v751
  %v1670 = vsub.f32 %v1660, %v1668
  %v1671 = vsub.f32 %v1661, %v1669
  %v1672 = vmul.f32 %v1670, %v1670
  %v1673 = vmul.f32 %v1671, %v1671
  %v1674 = vsel %vm92, %v1672, 0.0
  %1675 = vadd.xlane.f32.xlu0 %v1674
  %v1676 = vpop.xlane.xlu0 %1675
  %v1677 = vsel %vm92, %v1673, 0.0
  %1678 = vadd.xlane.f32.xlu0 %v1677
  %v1679 = vpop.xlane.xlu0 %1678
  %v1680 = vmul.f32 %v1676, %v751
  %v1681 = vmul.f32 %v1679, %v751
  %v1682 = vadd.f32 %v1680, 1e-05
  %v1683 = vadd.f32 %v1681, 1e-05
  %v1684 = vrsqrt.pop %v1682
  %v1685 = vrsqrt.pop %v1683
  %v1686 = vmul.f32 %v1670, %v1684
  %v1687 = vmul.f32 %v1671, %v1685
  %v1688 = vlaneseq
  %v1689 = vshrl.u32 %v1688, 7
  %v1690 = vsub.s32 4, %v1689
  %v1691 = vrot.slane %v1011, %v1690
  %v1692 = vmul.f32 %v1686, %v1691
  %v1693 = vmul.f32 %v1687, %v1691
  %v1694 = vlaneseq
  %v1695 = vshrl.u32 %v1694, 7
  %v1696 = vsub.s32 5, %v1695
  %v1697 = vrot.slane %v1011, %v1696
  %v1698 = vadd.f32 %v1692, %v1697
  %v1699 = vadd.f32 %v1693, %v1697
  %s1700 = scalar_lea.vmem %s7, 32
  %v1701 = vld [vmem:[%s1700] sm:$0xff]
  %v1702 = vld [vmem:[%s1700 + $0x8] sm:$0xff]
  %v1703 = vld [vmem:[%s1700 + $0x10] sm:$0xff]
  %v1704 = vld [vmem:[%s1700 + $0x18] sm:$0xff]
  %v1705 = vlaneseq
  %v1706 = vshrl.u32 %v1705, 7
  %v1707 = vsub.s32 6, %v1706
  %v1708 = vrot.slane %v1011, %v1707
  %v1710 = vsel %vm92, %v1698, 0
  %v1713 = vsel %vm92, %v1699, 0
  %1715 = vmatprep.subr.mxu0 0.0
  %1716 = vmatpush1.msra.mxu0 %v1701
  %1717 = vmatprep.subr.mxu0 0.0
  %1718 = vmatpush1.msra.mxu0 %v1702
  %1719 = vmatprep.subr.mxu0 0.0
  %1720 = vmatpush1.msra.mxu0 %v1703
  %1721 = vmatprep.subr.mxu0 0.0
  %1722 = vmatpush1.msra.mxu0 %v1704
  %1723 = vmatprep.subr.mxu0 0.0
  %1724 = vmatpush1.msra.mxu0 0.0
  %1725 = vmatprep.subr.mxu0 0.0
  %1726 = vmatpush1.msra.mxu0 0.0
  %1727 = vmatprep.subr.mxu0 0.0
  %1728 = vmatpush1.msra.mxu0 0.0
  %1729 = vmatprep.subr.mxu0 0.0
  %1730 = vmatpush1.msra.mxu0 0.0
  %1731 = vmatprep.subr.mxu0 0.0
  %1732 = vmatpush1.msra.mxu0 0.0
  %1733 = vmatprep.subr.mxu0 0.0
  %1734 = vmatpush1.msra.mxu0 0.0
  %1735 = vmatprep.subr.mxu0 0.0
  %1736 = vmatpush1.msra.mxu0 0.0
  %1737 = vmatprep.subr.mxu0 0.0
  %1738 = vmatpush1.msra.mxu0 0.0
  %1739 = vmatprep.subr.mxu0 0.0
  %1740 = vmatpush1.msra.mxu0 0.0
  %1741 = vmatprep.subr.mxu0 0.0
  %1742 = vmatpush1.msra.mxu0 0.0
  %1743 = vmatprep.subr.mxu0 0.0
  %1744 = vmatpush1.msra.mxu0 0.0
  %1745 = vmatprep.subr.mxu0 0.0
  %1746 = vmatpush1.msra.mxu0 0.0
  %1747 = vmatprep.subr.mxu0 0.0
  %1748 = vmatpush1.msra.mxu0 0.0
  %1749 = vmatprep.subr.mxu0 0.0
  %1750 = vmatpush1.msra.mxu0 0.0
  %1751 = vmatprep.subr.mxu0 0.0
  %1752 = vmatpush1.msra.mxu0 0.0
  %1753 = vmatprep.subr.mxu0 0.0
  %1754 = vmatpush1.msra.mxu0 0.0
  %1755 = vmatprep.subr.mxu0 0.0
  %1756 = vmatpush1.msra.mxu0 0.0
  %1757 = vmatprep.subr.mxu0 0.0
  %1758 = vmatpush1.msra.mxu0 0.0
  %1759 = vmatprep.subr.mxu0 0.0
  %1760 = vmatpush1.msra.mxu0 0.0
  %1761 = vmatprep.subr.mxu0 0.0
  %1762 = vmatpush1.msra.mxu0 0.0
  %1763 = vmatprep.subr.mxu0 0.0
  %1764 = vmatpush1.msra.mxu0 0.0
  %1765 = vmatprep.subr.mxu0 0.0
  %1766 = vmatpush1.msra.mxu0 0.0
  %1767 = vmatprep.subr.mxu0 0.0
  %1768 = vmatpush1.msra.mxu0 0.0
  %1769 = vmatprep.subr.mxu0 0.0
  %1770 = vmatpush1.msra.mxu0 0.0
  %1771 = vmatprep.subr.mxu0 0.0
  %1772 = vmatpush1.msra.mxu0 0.0
  %1773 = vmatprep.subr.mxu0 0.0
  %1774 = vmatpush1.msra.mxu0 0.0
  %1775 = vmatprep.subr.mxu0 0.0
  %1776 = vmatpush1.msra.mxu0 0.0
  %1777 = vmatprep.subr.mxu0 0.0
  %1778 = vmatpush1.msra.mxu0 0.0
  %1779 = vmatprep.mubr.f32.mxu0 0.0
  %1780 = vmatmul.mubr.f32.gmra.mrb[0].mxu0 %v1710
  %v1781 = vpop.f32.mrb[0].mxu0
  %v1782 = vadd.f32 %v1708, %v1781
  %v1783 = vpop.f32.mrb[0].mxu0
  %1784 = vmatprep.mubr.f32.mxu0 0.0
  %1785 = vmatmul.mubr.f32.gmra.mrb[0].mxu0 %v1713
  %v1786 = vpop.f32.mrb[0].mxu0
  %v1787 = vadd.f32 %v1708, %v1786
  %v1788 = vpop.f32.mrb[0].mxu0
  %1789 = vdwg.mxu0
  %v1790 = vmax.f32 %v1782, 0.0
  %v1791 = vmax.f32 %v1787, 0.0
  %s1792 = scalar_lea.vmem %s8, 128
  %v1793 = vld [vmem:[%s1792] sm:$0xff]
  %v1794 = vld [vmem:[%s1792 + $0x8] sm:$0xff]
  %v1795 = vld [vmem:[%s1792 + $0x10] sm:$0xff]
  %v1796 = vld [vmem:[%s1792 + $0x18] sm:$0xff]
  %v1797 = vld [vmem:[%s1792 + $0x20] sm:$0xff]
  %v1798 = vld [vmem:[%s1792 + $0x28] sm:$0xff]
  %v1799 = vld [vmem:[%s1792 + $0x30] sm:$0xff]
  %v1800 = vld [vmem:[%s1792 + $0x38] sm:$0xff]
  %v1801 = vld [vmem:[%s1792 + $0x40] sm:$0xff]
  %v1802 = vld [vmem:[%s1792 + $0x48] sm:$0xff]
  %v1803 = vld [vmem:[%s1792 + $0x50] sm:$0xff]
  %v1804 = vld [vmem:[%s1792 + $0x58] sm:$0xff]
  %v1805 = vld [vmem:[%s1792 + $0x60] sm:$0xff]
  %v1806 = vld [vmem:[%s1792 + $0x68] sm:$0xff]
  %v1807 = vld [vmem:[%s1792 + $0x70] sm:$0xff]
  %v1808 = vld [vmem:[%s1792 + $0x78] sm:$0xff]
  %v1809 = vlaneseq
  %v1810 = vshrl.u32 %v1809, 7
  %v1811 = vsub.s32 7, %v1810
  %v1812 = vrot.slane %v1011, %v1811
  %1813 = vmatprep.subr.mxu0 0.0
  %1814 = vmatpush1.msra.mxu0 %v1793
  %1815 = vmatprep.subr.mxu0 0.0
  %1816 = vmatpush1.msra.mxu0 %v1794
  %1817 = vmatprep.subr.mxu0 0.0
  %1818 = vmatpush1.msra.mxu0 %v1795
  %1819 = vmatprep.subr.mxu0 0.0
  %1820 = vmatpush1.msra.mxu0 %v1796
  %1821 = vmatprep.subr.mxu0 0.0
  %1822 = vmatpush1.msra.mxu0 %v1797
  %1823 = vmatprep.subr.mxu0 0.0
  %1824 = vmatpush1.msra.mxu0 %v1798
  %1825 = vmatprep.subr.mxu0 0.0
  %1826 = vmatpush1.msra.mxu0 %v1799
  %1827 = vmatprep.subr.mxu0 0.0
  %1828 = vmatpush1.msra.mxu0 %v1800
  %1829 = vmatprep.subr.mxu0 0.0
  %1830 = vmatpush1.msra.mxu0 %v1801
  %1831 = vmatprep.subr.mxu0 0.0
  %1832 = vmatpush1.msra.mxu0 %v1802
  %1833 = vmatprep.subr.mxu0 0.0
  %1834 = vmatpush1.msra.mxu0 %v1803
  %1835 = vmatprep.subr.mxu0 0.0
  %1836 = vmatpush1.msra.mxu0 %v1804
  %1837 = vmatprep.subr.mxu0 0.0
  %1838 = vmatpush1.msra.mxu0 %v1805
  %1839 = vmatprep.subr.mxu0 0.0
  %1840 = vmatpush1.msra.mxu0 %v1806
  %1841 = vmatprep.subr.mxu0 0.0
  %1842 = vmatpush1.msra.mxu0 %v1807
  %1843 = vmatprep.subr.mxu0 0.0
  %1844 = vmatpush1.msra.mxu0 %v1808
  %1845 = vmatprep.subr.mxu0 0.0
  %1846 = vmatpush1.msra.mxu0 0.0
  %1847 = vmatprep.subr.mxu0 0.0
  %1848 = vmatpush1.msra.mxu0 0.0
  %1849 = vmatprep.subr.mxu0 0.0
  %1850 = vmatpush1.msra.mxu0 0.0
  %1851 = vmatprep.subr.mxu0 0.0
  %1852 = vmatpush1.msra.mxu0 0.0
  %1853 = vmatprep.subr.mxu0 0.0
  %1854 = vmatpush1.msra.mxu0 0.0
  %1855 = vmatprep.subr.mxu0 0.0
  %1856 = vmatpush1.msra.mxu0 0.0
  %1857 = vmatprep.subr.mxu0 0.0
  %1858 = vmatpush1.msra.mxu0 0.0
  %1859 = vmatprep.subr.mxu0 0.0
  %1860 = vmatpush1.msra.mxu0 0.0
  %1861 = vmatprep.subr.mxu0 0.0
  %1862 = vmatpush1.msra.mxu0 0.0
  %1863 = vmatprep.subr.mxu0 0.0
  %1864 = vmatpush1.msra.mxu0 0.0
  %1865 = vmatprep.subr.mxu0 0.0
  %1866 = vmatpush1.msra.mxu0 0.0
  %1867 = vmatprep.subr.mxu0 0.0
  %1868 = vmatpush1.msra.mxu0 0.0
  %1869 = vmatprep.subr.mxu0 0.0
  %1870 = vmatpush1.msra.mxu0 0.0
  %1871 = vmatprep.subr.mxu0 0.0
  %1872 = vmatpush1.msra.mxu0 0.0
  %1873 = vmatprep.subr.mxu0 0.0
  %1874 = vmatpush1.msra.mxu0 0.0
  %1875 = vmatprep.subr.mxu0 0.0
  %1876 = vmatpush1.msra.mxu0 0.0
  %1877 = vmatprep.mubr.f32.mxu0 0.0
  %1878 = vmatmul.mubr.f32.gmra.mrb[0].mxu0 %v1790
  %v1879 = vpop.f32.mrb[0].mxu0
  %v1880 = vadd.f32 %v1812, %v1879
  %v1881 = vpop.f32.mrb[0].mxu0
  %1882 = vmatprep.mubr.f32.mxu0 0.0
  %1883 = vmatmul.mubr.f32.gmra.mrb[0].mxu0 %v1791
  %v1884 = vpop.f32.mrb[0].mxu0
  %v1885 = vadd.f32 %v1812, %v1884
  %v1886 = vpop.f32.mrb[0].mxu0
  %1887 = vdwg.mxu0
  %v1888 = vadd.f32 %v1698, %v1880
  %v1889 = vadd.f32 %v1699, %v1885
  %v1890 = vsel %vm92, %v1888, 0.0
  %1891 = vadd.xlane.f32.xlu0 %v1890
  %v1892 = vpop.xlane.xlu0 %1891
  %v1893 = vsel %vm92, %v1889, 0.0
  %1894 = vadd.xlane.f32.xlu0 %v1893
  %v1895 = vpop.xlane.xlu0 %1894
  %v1896 = vmul.f32 %v1892, %v751
  %v1897 = vmul.f32 %v1895, %v751
  %v1898 = vsub.f32 %v1888, %v1896
  %v1899 = vsub.f32 %v1889, %v1897
  %v1900 = vmul.f32 %v1898, %v1898
  %v1901 = vmul.f32 %v1899, %v1899
  %v1902 = vsel %vm92, %v1900, 0.0
  %1903 = vadd.xlane.f32.xlu0 %v1902
  %v1904 = vpop.xlane.xlu0 %1903
  %v1905 = vsel %vm92, %v1901, 0.0
  %1906 = vadd.xlane.f32.xlu0 %v1905
  %v1907 = vpop.xlane.xlu0 %1906
  %v1908 = vmul.f32 %v1904, %v751
  %v1909 = vmul.f32 %v1907, %v751
  %v1910 = vadd.f32 %v1908, 1e-05
  %v1911 = vadd.f32 %v1909, 1e-05
  %v1912 = vrsqrt.pop %v1910
  %v1913 = vrsqrt.pop %v1911
  %v1914 = vmul.f32 %v1898, %v1912
  %v1915 = vmul.f32 %v1899, %v1913
  %v1916 = vlaneseq
  %v1917 = vshrl.u32 %v1916, 7
  %v1918 = vsub.s32 0, %v1917
  %v1919 = vrot.slane %v1012, %v1918
  %v1920 = vmul.f32 %v1914, %v1919
  %v1921 = vmul.f32 %v1915, %v1919
  %v1922 = vlaneseq
  %v1923 = vshrl.u32 %v1922, 7
  %v1924 = vsub.s32 1, %v1923
  %v1925 = vrot.slane %v1012, %v1924
  %v1926 = vadd.f32 %v1920, %v1925
  %v1927 = vadd.f32 %v1921, %v1925
  %v1928 = vlaneseq
  %v1929 = vshrl.u32 %v1928, 7
  %v1930 = vmul.u32 %v1929, 8
  %v1931 = vadd.s32 %v1930, 7
  %vm1932 = vcmp.eq.s32.totalorder %v81, %v1931
  %v1933 = vsel %vm1932, 1, 0
  %v1934 = vcvt.s32.f32 %v1933
  %vm1935 = vcmask 130048
  %v1937 = vsel %vm1935, %v1934, 0
  %1939 = vmatprep.subr.mxu0 0.0
  %1940 = vmatpush1.msra.mxu0 %v1926
  %1941 = vmatprep.subr.mxu0 0.0
  %1942 = vmatpush1.msra.mxu0 %v1927
  %1943 = vmatprep.subr.mxu0 0.0
  %1944 = vmatpush1.msra.mxu0 0.0
  %1945 = vmatprep.subr.mxu0 0.0
  %1946 = vmatpush1.msra.mxu0 0.0
  %1947 = vmatprep.subr.mxu0 0.0
  %1948 = vmatpush1.msra.mxu0 0.0
  %1949 = vmatprep.subr.mxu0 0.0
  %1950 = vmatpush1.msra.mxu0 0.0
  %1951 = vmatprep.subr.mxu0 0.0
  %1952 = vmatpush1.msra.mxu0 0.0
  %1953 = vmatprep.subr.mxu0 0.0
  %1954 = vmatpush1.msra.mxu0 0.0
  %1955 = vmatprep.subr.mxu0 0.0
  %1956 = vmatpush1.msra.mxu0 0.0
  %1957 = vmatprep.subr.mxu0 0.0
  %1958 = vmatpush1.msra.mxu0 0.0
  %1959 = vmatprep.subr.mxu0 0.0
  %1960 = vmatpush1.msra.mxu0 0.0
  %1961 = vmatprep.subr.mxu0 0.0
  %1962 = vmatpush1.msra.mxu0 0.0
  %1963 = vmatprep.subr.mxu0 0.0
  %1964 = vmatpush1.msra.mxu0 0.0
  %1965 = vmatprep.subr.mxu0 0.0
  %1966 = vmatpush1.msra.mxu0 0.0
  %1967 = vmatprep.subr.mxu0 0.0
  %1968 = vmatpush1.msra.mxu0 0.0
  %1969 = vmatprep.subr.mxu0 0.0
  %1970 = vmatpush1.msra.mxu0 0.0
  %1971 = vmatprep.subr.mxu0 0.0
  %1972 = vmatpush1.msra.mxu0 0.0
  %1973 = vmatprep.subr.mxu0 0.0
  %1974 = vmatpush1.msra.mxu0 0.0
  %1975 = vmatprep.subr.mxu0 0.0
  %1976 = vmatpush1.msra.mxu0 0.0
  %1977 = vmatprep.subr.mxu0 0.0
  %1978 = vmatpush1.msra.mxu0 0.0
  %1979 = vmatprep.subr.mxu0 0.0
  %1980 = vmatpush1.msra.mxu0 0.0
  %1981 = vmatprep.subr.mxu0 0.0
  %1982 = vmatpush1.msra.mxu0 0.0
  %1983 = vmatprep.subr.mxu0 0.0
  %1984 = vmatpush1.msra.mxu0 0.0
  %1985 = vmatprep.subr.mxu0 0.0
  %1986 = vmatpush1.msra.mxu0 0.0
  %1987 = vmatprep.subr.mxu0 0.0
  %1988 = vmatpush1.msra.mxu0 0.0
  %1989 = vmatprep.subr.mxu0 0.0
  %1990 = vmatpush1.msra.mxu0 0.0
  %1991 = vmatprep.subr.mxu0 0.0
  %1992 = vmatpush1.msra.mxu0 0.0
  %1993 = vmatprep.subr.mxu0 0.0
  %1994 = vmatpush1.msra.mxu0 0.0
  %1995 = vmatprep.subr.mxu0 0.0
  %1996 = vmatpush1.msra.mxu0 0.0
  %1997 = vmatprep.subr.mxu0 0.0
  %1998 = vmatpush1.msra.mxu0 0.0
  %1999 = vmatprep.subr.mxu0 0.0
  %2000 = vmatpush1.msra.mxu0 0.0
  %2001 = vmatprep.subr.mxu0 0.0
  %2002 = vmatpush1.msra.mxu0 0.0
  %2003 = vmatprep.mubr.f32.mxu0 0.0
  %2004 = vmatmul.mubr.f32.gmra.mrb[0].mxu0 %v1937
  %v2005 = vpop.f32.mrb[0].mxu0
  %v2006 = vadd.f32 0.0, %v2005
  %v2007 = vpop.f32.mrb[0].mxu0
  %2008 = vdwg.mxu0
  %v2009 = vld [vmem:[%s10] sm:$0xff]
  %v2010 = vld [vmem:[%s10 + $0x8] sm:$0xff]
  %v2011 = vld [vmem:[%s10 + $0x10] sm:$0xff]
  %v2012 = vld [vmem:[%s10 + $0x18] sm:$0xff]
  %v2013 = vld [vmem:[%s11] sm:$0x1]
  %v2015 = vlaneseq
  %v2016 = vshrl.u32 %v2015, 7
  %v2017 = vsub.s32 0, %v2016
  %v2018 = vrot.slane %v2013, %v2017
  %v2021 = vsel %vm92, %v2006, 0
  %2023 = vmatprep.subr.mxu0 0.0
  %2024 = vmatpush1.msra.mxu0 %v2009
  %2025 = vmatprep.subr.mxu0 0.0
  %2026 = vmatpush1.msra.mxu0 %v2010
  %2027 = vmatprep.subr.mxu0 0.0
  %2028 = vmatpush1.msra.mxu0 %v2011
  %2029 = vmatprep.subr.mxu0 0.0
  %2030 = vmatpush1.msra.mxu0 %v2012
  %2031 = vmatprep.subr.mxu0 0.0
  %2032 = vmatpush1.msra.mxu0 0.0
  %2033 = vmatprep.subr.mxu0 0.0
  %2034 = vmatpush1.msra.mxu0 0.0
  %2035 = vmatprep.subr.mxu0 0.0
  %2036 = vmatpush1.msra.mxu0 0.0
  %2037 = vmatprep.subr.mxu0 0.0
  %2038 = vmatpush1.msra.mxu0 0.0
  %2039 = vmatprep.subr.mxu0 0.0
  %2040 = vmatpush1.msra.mxu0 0.0
  %2041 = vmatprep.subr.mxu0 0.0
  %2042 = vmatpush1.msra.mxu0 0.0
  %2043 = vmatprep.subr.mxu0 0.0
  %2044 = vmatpush1.msra.mxu0 0.0
  %2045 = vmatprep.subr.mxu0 0.0
  %2046 = vmatpush1.msra.mxu0 0.0
  %2047 = vmatprep.subr.mxu0 0.0
  %2048 = vmatpush1.msra.mxu0 0.0
  %2049 = vmatprep.subr.mxu0 0.0
  %2050 = vmatpush1.msra.mxu0 0.0
  %2051 = vmatprep.subr.mxu0 0.0
  %2052 = vmatpush1.msra.mxu0 0.0
  %2053 = vmatprep.subr.mxu0 0.0
  %2054 = vmatpush1.msra.mxu0 0.0
  %2055 = vmatprep.subr.mxu0 0.0
  %2056 = vmatpush1.msra.mxu0 0.0
  %2057 = vmatprep.subr.mxu0 0.0
  %2058 = vmatpush1.msra.mxu0 0.0
  %2059 = vmatprep.subr.mxu0 0.0
  %2060 = vmatpush1.msra.mxu0 0.0
  %2061 = vmatprep.subr.mxu0 0.0
  %2062 = vmatpush1.msra.mxu0 0.0
  %2063 = vmatprep.subr.mxu0 0.0
  %2064 = vmatpush1.msra.mxu0 0.0
  %2065 = vmatprep.subr.mxu0 0.0
  %2066 = vmatpush1.msra.mxu0 0.0
  %2067 = vmatprep.subr.mxu0 0.0
  %2068 = vmatpush1.msra.mxu0 0.0
  %2069 = vmatprep.subr.mxu0 0.0
  %2070 = vmatpush1.msra.mxu0 0.0
  %2071 = vmatprep.subr.mxu0 0.0
  %2072 = vmatpush1.msra.mxu0 0.0
  %2073 = vmatprep.subr.mxu0 0.0
  %2074 = vmatpush1.msra.mxu0 0.0
  %2075 = vmatprep.subr.mxu0 0.0
  %2076 = vmatpush1.msra.mxu0 0.0
  %2077 = vmatprep.subr.mxu0 0.0
  %2078 = vmatpush1.msra.mxu0 0.0
  %2079 = vmatprep.subr.mxu0 0.0
  %2080 = vmatpush1.msra.mxu0 0.0
  %2081 = vmatprep.subr.mxu0 0.0
  %2082 = vmatpush1.msra.mxu0 0.0
  %2083 = vmatprep.subr.mxu0 0.0
  %2084 = vmatpush1.msra.mxu0 0.0
  %2085 = vmatprep.subr.mxu0 0.0
  %2086 = vmatpush1.msra.mxu0 0.0
  %2087 = vmatprep.mubr.f32.mxu0 0.0
  %2088 = vmatmul.mubr.f32.gmra.mrb[0].mxu0 %v2021
  %v2089 = vpop.f32.mrb[0].mxu0
  %v2090 = vadd.f32 %v2018, %v2089
  %v2091 = vpop.f32.mrb[0].mxu0
  %2092 = vdwg.mxu0
  %vm2093 = vcmask 33792
  %2094 = vst.msk [vmem:[%s12] sm:$0x3] %vm2093, %v2090
  // Predicated region
  $region50: #{forward.1} parent=0 // pred_check
    _
  $region51: #{forward.1} parent=0 // pred_check_branch
    %2096 = sbr.rel (0) target = $region53
  $region52: #{forward.1} parent=0 // pred_region
    _
  $region53: #{forward.1} parent=0 // pred_fallthru
    _
  // Predicated region
  $region54: #{forward.1} parent=0 // pred_check
    _
  $region55: #{forward.1} parent=0 // pred_check_branch
    %2098 = sbr.rel (0) target = $region57
  $region56: #{forward.1} parent=0 // pred_region
    _
  $region57: #{forward.1} parent=0 // pred_fallthru
    _

</llo_original>
